<compile_context>
chip_gen: v5e
topology: v5e:2x2
jax: 0.10.0
libtpu: 0.0.40
codegen_flags: <defaults>
</compile_context>

<pallas_src>
import numpy as np
import jax
import jax.numpy as jnp
from jax.experimental import pallas as pl
from jax.experimental.pallas import tpu as pltpu

# ---------------- configuration (small, consistent with the module) ----------------
B = 2           # batch
T = 8           # sequence length (n_ctx)
NX = 32         # n_embd
NH = 4          # n_head
HD = NX // NH   # head dim
NS = 4 * NX     # MLP inner dim (n_state)
EPS = 1e-5      # layer_norm_epsilon
SCALE_ATTN = False  # Block(..., scale=False) default in the reference module.
                    # (HF GPT2Model constructs Block(scale=True); flip here AND in the
                    # reference if mirroring the full model is intended.)


def _layernorm(x, gamma, beta):
    mu = jnp.mean(x, axis=-1, keepdims=True)
    var = jnp.mean(jnp.square(x - mu), axis=-1, keepdims=True)
    return (x - mu) * jax.lax.rsqrt(var + EPS) * gamma + beta


def block_kernel(x_ref,
                 g1_ref, bt1_ref,
                 w_attn_ref, b_attn_ref, w_aproj_ref, b_aproj_ref,
                 g2_ref, bt2_ref,
                 w_fc_ref, b_fc_ref, w_mproj_ref, b_mproj_ref,
                 out_ref,
                 oh_ref):
    # One grid step = one batch element (T rows).
    x = x_ref[0].astype(jnp.float32)                      # (T, NX)

    # ---- ln_1 (f32 elementwise math) ----
    h = _layernorm(x, g1_ref[0], bt1_ref[0])              # (T, NX)

    # ---- attention ----
    # Single lane-dense QKV projection: (T, NX) @ (NX, 3*NX) -> (T, 96), f32 accumulation.
    qkv = jnp.dot(h.astype(jnp.bfloat16), w_attn_ref[...],
                  preferred_element_type=jnp.float32) + b_attn_ref[0]   # (T, 3*NX)

    # Causal mask computed once, shared across heads.
    row = jax.lax.broadcasted_iota(jnp.int32, (T, T), 0)
    col = jax.lax.broadcasted_iota(jnp.int32, (T, T), 1)
    causal = col <= row

    # Per-head attention (static unroll over NH=4 heads).  Head outputs are merged back
    # onto lanes exactly once via the VMEM scratch, so the output projection below is a
    # single (T, NX) @ (NX, NX) matmul with the original c_proj weight.
    for g in range(NH):
        qg = qkv[:, g * HD:(g + 1) * HD]                           # (T, HD)
        kg = qkv[:, NX + g * HD:NX + (g + 1) * HD]                 # (T, HD)
        vg = qkv[:, 2 * NX + g * HD:2 * NX + (g + 1) * HD]         # (T, HD)

        # q @ k^T (contract last dims), f32 accumulation.
        s = jax.lax.dot_general(
            qg.astype(jnp.bfloat16), kg.astype(jnp.bfloat16),
            dimension_numbers=(((1,), (1,)), ((), ())),
            preferred_element_type=jnp.float32)                    # (T, T)
        if SCALE_ATTN:
            s = s * jnp.float32(1.0 / np.sqrt(HD))
        s = jnp.where(causal, s, jnp.float32(-1e4))                # GPT-2 mask value

        # Explicit softmax; the reciprocal goes to the otherwise-idle EUP slot.
        m = jnp.max(s, axis=-1, keepdims=True)
        e = jnp.exp(s - m)
        p = e * pl.reciprocal(jnp.sum(e, axis=-1, keepdims=True), approx=True)

        og = jnp.dot(p.astype(jnp.bfloat16), vg.astype(jnp.bfloat16),
                     preferred_element_type=jnp.float32)           # (T, HD)
        oh_ref[:, g * HD:(g + 1) * HD] = og                        # merge head onto lanes

    o = oh_ref[...]                                                # (T, NX)
    a = jnp.dot(o.astype(jnp.bfloat16), w_aproj_ref[...],
                preferred_element_type=jnp.float32) + b_aproj_ref[0]    # (T, NX)
    # TODO(synk): attn/resid dropout and the (presents, attentions) extra outputs of the
    # reference Block are not produced (inference mode, dropout = identity).

    x1 = x + a                                                     # residual 1

    # ---- ln_2 + MLP (Conv1D -> gelu_new -> Conv1D) ----
    h2 = _layernorm(x1, g2_ref[0], bt2_ref[0])                     # (T, NX)
    fc = jnp.dot(h2.astype(jnp.bfloat16), w_fc_ref[...],
                 preferred_element_type=jnp.float32) + b_fc_ref[0]       # (T, NS) 128 lanes
    fc = jax.nn.gelu(fc, approximate=True)                         # gelu_new (tanh), f32
    mlp = jnp.dot(fc.astype(jnp.bfloat16), w_mproj_ref[...],
                  preferred_element_type=jnp.float32) + b_mproj_ref[0]   # (T, NX)

    # NOTE: final store last dim is NX=32 (<128 lanes) -> masked vst; acceptable at this
    # toy width, becomes lane-dense automatically at real GPT-2 width (768).
    out_ref[0, :, :] = (x1 + mlp).astype(out_ref.dtype)            # residual 2


def transformer_block(x, params):
    (g1, bt1, w_attn, b_attn, w_aproj, b_aproj,
     g2, bt2, w_fc, b_fc, w_mproj, b_mproj) = params

    # bf16 weights at the call boundary (half the weight DMA bytes, no in-kernel casts).
    # Biases / LayerNorm params stay f32: they feed f32 adds / f32 elementwise math.
    w_attn_bf = w_attn.astype(jnp.bfloat16)
    w_aproj_bf = w_aproj.astype(jnp.bfloat16)
    w_fc_bf = w_fc.astype(jnp.bfloat16)
    w_mproj_bf = w_mproj.astype(jnp.bfloat16)

    def rep(shape):
        return pl.BlockSpec(shape, lambda b: tuple(0 for _ in shape))

    out = pl.pallas_call(
        block_kernel,
        out_shape=jax.ShapeDtypeStruct((B, T, NX), x.dtype),
        grid_spec=pltpu.PrefetchScalarGridSpec(
            num_scalar_prefetch=0,
            grid=(B,),
            in_specs=[
                pl.BlockSpec((1, T, NX), lambda b: (b, 0, 0)),   # x (one batch element)
                rep((1, NX)), rep((1, NX)),                      # ln_1 gamma / beta
                rep((NX, 3 * NX)), rep((1, 3 * NX)),             # c_attn W (bf16) / b
                rep((NX, NX)), rep((1, NX)),                     # attn c_proj W (bf16) / b
                rep((1, NX)), rep((1, NX)),                      # ln_2 gamma / beta
                rep((NX, NS)), rep((1, NS)),                     # mlp c_fc W (bf16) / b
                rep((NS, NX)), rep((1, NX)),                     # mlp c_proj W (bf16) / b
            ],
            out_specs=pl.BlockSpec((1, T, NX), lambda b: (b, 0, 0)),
            scratch_shapes=[pltpu.VMEM((T, NX), jnp.float32)],   # per-head output merge
        ),
        # "parallel" lets v7x shard the batch axis over its two TensorCores; it is
        # harmless on v5e / v6e (single TC).
        compiler_params=pltpu.CompilerParams(
            dimension_semantics=("parallel",)),
    )(x, g1, bt1, w_attn_bf, b_attn, w_aproj_bf, b_aproj,
      g2, bt2, w_fc_bf, b_fc, w_mproj_bf, b_mproj)
    return out


def reference_block(x, params):
    (g1, bt1, w_attn, b_attn, w_aproj, b_aproj,
     g2, bt2, w_fc, b_fc, w_mproj, b_mproj) = params
    x = x.astype(jnp.float32)
    h = _layernorm(x, g1[0], bt1[0])
    qkv = h @ w_attn + b_attn[0]
    q, k, v = jnp.split(qkv, 3, axis=-1)
    q = q.reshape(B, T, NH, HD).transpose(0, 2, 1, 3)
    k = k.reshape(B, T, NH, HD).transpose(0, 2, 1, 3)
    v = v.reshape(B, T, NH, HD).transpose(0, 2, 1, 3)
    s = jnp.einsum('bhqd,bhkd->bhqk', q, k)
    if SCALE_ATTN:
        s = s / np.sqrt(HD)
    mask = jnp.tril(jnp.ones((T, T), bool))
    s = jnp.where(mask, s, -1e4)
    p = jax.nn.softmax(s, axis=-1)
    a = jnp.einsum('bhqk,bhkd->bhqd', p, v).transpose(0, 2, 1, 3).reshape(B, T, NX)
    a = a @ w_aproj + b_aproj[0]
    x1 = x + a
    h2 = _layernorm(x1, g2[0], bt2[0])
    m = jax.nn.gelu(h2 @ w_fc + b_fc[0], approximate=True) @ w_mproj + b_mproj[0]
    return x1 + m


def init_params(key):
    ks = jax.random.split(key, 6)
    std = 0.02
    g1 = jnp.ones((1, NX), jnp.float32)
    bt1 = jnp.zeros((1, NX), jnp.float32)
    w_attn = std * jax.random.normal(ks[0], (NX, 3 * NX), jnp.float32)
    b_attn = jnp.zeros((1, 3 * NX), jnp.float32)
    w_aproj = std * jax.random.normal(ks[1], (NX, NX), jnp.float32)
    b_aproj = jnp.zeros((1, NX), jnp.float32)
    g2 = jnp.ones((1, NX), jnp.float32)
    bt2 = jnp.zeros((1, NX), jnp.float32)
    w_fc = std * jax.random.normal(ks[2], (NX, NS), jnp.float32)
    b_fc = jnp.zeros((1, NS), jnp.float32)
    w_mproj = std * jax.random.normal(ks[3], (NS, NX), jnp.float32)
    b_mproj = jnp.zeros((1, NX), jnp.float32)
    return (g1, bt1, w_attn, b_attn, w_aproj, b_aproj,
            g2, bt2, w_fc, b_fc, w_mproj, b_mproj)


if __name__ == "__main__":
    key = jax.random.PRNGKey(0)
    kx, kp = jax.random.split(key)
    x = jax.random.normal(kx, (B, T, NX), jnp.float32)
    params = init_params(kp)

    out = transformer_block(x, params)
    out = jax.block_until_ready(out)

    ref = reference_block(x, params)
    # Tolerance loosened because matmul operands are bf16 (f32 accumulation) and the
    # softmax reciprocal uses the approximate EUP path.
    np.testing.assert_allclose(np.asarray(out), np.asarray(ref), rtol=2e-2, atol=2e-2)

    print("KERNEL_OK")
</pallas_src>

<mosaic_0001>
module attributes {stable_mosaic.version = 11 : i64} {
  func.func @block_kernel(%arg0: i32, %arg1: memref<1x8x32xf32, #tpu.memory_space<vmem>>, %arg2: memref<1x32xf32, #tpu.memory_space<vmem>>, %arg3: memref<1x32xf32, #tpu.memory_space<vmem>>, %arg4: memref<32x96xbf16, #tpu.memory_space<vmem>>, %arg5: memref<1x96xf32, #tpu.memory_space<vmem>>, %arg6: memref<32x32xbf16, #tpu.memory_space<vmem>>, %arg7: memref<1x32xf32, #tpu.memory_space<vmem>>, %arg8: memref<1x32xf32, #tpu.memory_space<vmem>>, %arg9: memref<1x32xf32, #tpu.memory_space<vmem>>, %arg10: memref<32x128xbf16, #tpu.memory_space<vmem>>, %arg11: memref<1x128xf32, #tpu.memory_space<vmem>>, %arg12: memref<128x32xbf16, #tpu.memory_space<vmem>>, %arg13: memref<1x32xf32, #tpu.memory_space<vmem>>, %arg14: memref<1x8x32xf32, #tpu.memory_space<vmem>>, %arg15: memref<8x32xf32, #tpu.memory_space<vmem>>) attributes {dimension_semantics = [#tpu.dimension_semantics<parallel>], iteration_bounds = array<i64: 2>, scalar_prefetch = 0 : i64, scratch_operands = 1 : i64, tpu.core_type = #tpu.core_type<tc>, window_params = [{transform_indices = @transform_0, window_bounds = array<i64: 1, 8, 32>}, {pipeline_mode = #tpu.pipeline_mode<synchronous>, transform_indices = @transform_1, window_bounds = array<i64: 1, 32>}, {pipeline_mode = #tpu.pipeline_mode<synchronous>, transform_indices = @transform_2, window_bounds = array<i64: 1, 32>}, {pipeline_mode = #tpu.pipeline_mode<synchronous>, transform_indices = @transform_3, window_bounds = array<i64: 32, 96>}, {pipeline_mode = #tpu.pipeline_mode<synchronous>, transform_indices = @transform_4, window_bounds = array<i64: 1, 96>}, {pipeline_mode = #tpu.pipeline_mode<synchronous>, transform_indices = @transform_5, window_bounds = array<i64: 32, 32>}, {pipeline_mode = #tpu.pipeline_mode<synchronous>, transform_indices = @transform_6, window_bounds = array<i64: 1, 32>}, {pipeline_mode = #tpu.pipeline_mode<synchronous>, transform_indices = @transform_7, window_bounds = array<i64: 1, 32>}, {pipeline_mode = #tpu.pipeline_mode<synchronous>, transform_indices = @transform_8, window_bounds = array<i64: 1, 32>}, {pipeline_mode = #tpu.pipeline_mode<synchronous>, transform_indices = @transform_9, window_bounds = array<i64: 32, 128>}, {pipeline_mode = #tpu.pipeline_mode<synchronous>, transform_indices = @transform_10, window_bounds = array<i64: 1, 128>}, {pipeline_mode = #tpu.pipeline_mode<synchronous>, transform_indices = @transform_11, window_bounds = array<i64: 128, 32>}, {pipeline_mode = #tpu.pipeline_mode<synchronous>, transform_indices = @transform_12, window_bounds = array<i64: 1, 32>}, {transform_indices = @transform_13, window_bounds = array<i64: 1, 8, 32>}]} {
    %c0 = arith.constant 0 : index
    %c0_0 = arith.constant 0 : index
    %c0_1 = arith.constant 0 : index
    %0 = vector.load %arg1[%c0, %c0_0, %c0_1] : memref<1x8x32xf32, #tpu.memory_space<vmem>>, vector<1x8x32xf32>
    %1 = vector.shape_cast %0 : vector<1x8x32xf32> to vector<8x32xf32>
    %c0_2 = arith.constant 0 : index
    %c0_3 = arith.constant 0 : index
    %2 = vector.load %arg2[%c0_2, %c0_3] : memref<1x32xf32, #tpu.memory_space<vmem>>, vector<1x32xf32>
    %3 = vector.shape_cast %2 : vector<1x32xf32> to vector<32xf32>
    %c0_4 = arith.constant 0 : index
    %c0_5 = arith.constant 0 : index
    %4 = vector.load %arg3[%c0_4, %c0_5] : memref<1x32xf32, #tpu.memory_space<vmem>>, vector<1x32xf32>
    %5 = vector.shape_cast %4 : vector<1x32xf32> to vector<32xf32>
    %cst = arith.constant dense<0.000000e+00> : vector<8xf32>
    %6 = vector.multi_reduction <add>, %1, %cst [1] : vector<8x32xf32> to vector<8xf32>
    %7 = vector.shape_cast %6 : vector<8xf32> to vector<8x1xf32>
    %cst_6 = arith.constant 3.200000e+01 : f32
    %8 = vector.broadcast %cst_6 : f32 to vector<8x1xf32>
    %9 = arith.divf %7, %8 : vector<8x1xf32>
    %10 = vector.broadcast %9 : vector<8x1xf32> to vector<8x32xf32>
    %11 = arith.subf %1, %10 : vector<8x32xf32>
    %12 = arith.mulf %11, %11 : vector<8x32xf32>
    %cst_7 = arith.constant dense<0.000000e+00> : vector<8xf32>
    %13 = vector.multi_reduction <add>, %12, %cst_7 [1] : vector<8x32xf32> to vector<8xf32>
    %14 = vector.shape_cast %13 : vector<8xf32> to vector<8x1xf32>
    %cst_8 = arith.constant 3.200000e+01 : f32
    %15 = vector.broadcast %cst_8 : f32 to vector<8x1xf32>
    %16 = arith.divf %14, %15 : vector<8x1xf32>
    %17 = vector.broadcast %9 : vector<8x1xf32> to vector<8x32xf32>
    %18 = arith.subf %1, %17 : vector<8x32xf32>
    %cst_9 = arith.constant 9.99999974E-6 : f32
    %19 = vector.broadcast %cst_9 : f32 to vector<8x1xf32>
    %20 = arith.addf %16, %19 : vector<8x1xf32>
    %21 = math.rsqrt %20 : vector<8x1xf32>
    %22 = vector.broadcast %21 : vector<8x1xf32> to vector<8x32xf32>
    %23 = arith.mulf %18, %22 : vector<8x32xf32>
    %24 = vector.shape_cast %3 : vector<32xf32> to vector<1x32xf32>
    %25 = vector.broadcast %24 : vector<1x32xf32> to vector<8x32xf32>
    %26 = arith.mulf %23, %25 : vector<8x32xf32>
    %27 = vector.shape_cast %5 : vector<32xf32> to vector<1x32xf32>
    %28 = vector.broadcast %27 : vector<1x32xf32> to vector<8x32xf32>
    %29 = arith.addf %26, %28 : vector<8x32xf32>
    %30 = arith.truncf %29 : vector<8x32xf32> to vector<8x32xbf16>
    %c0_10 = arith.constant 0 : index
    %c0_11 = arith.constant 0 : index
    %31 = vector.load %arg4[%c0_10, %c0_11] : memref<32x96xbf16, #tpu.memory_space<vmem>>, vector<32x96xbf16>
    %cst_12 = arith.constant dense<0.000000e+00> : vector<8x96xf32>
    %32 = tpu.matmul %30, %31, %cst_12 {dimension_numbers = #tpu.dot_dimension_numbers<[1], [0], [0], [1], [0, 0, 1, 1], [], []>} : vector<8x32xbf16>, vector<32x96xbf16>, vector<8x96xf32> -> vector<8x96xf32>
    %c0_13 = arith.constant 0 : index
    %c0_14 = arith.constant 0 : index
    %33 = vector.load %arg5[%c0_13, %c0_14] : memref<1x96xf32, #tpu.memory_space<vmem>>, vector<1x96xf32>
    %34 = vector.shape_cast %33 : vector<1x96xf32> to vector<96xf32>
    %35 = vector.shape_cast %34 : vector<96xf32> to vector<1x96xf32>
    %36 = vector.broadcast %35 : vector<1x96xf32> to vector<8x96xf32>
    %37 = arith.addf %32, %36 : vector<8x96xf32>
    %38 = tpu.iota {dimensions = array<i32: 0>} : vector<8x8xi32>
    %39 = tpu.iota {dimensions = array<i32: 1>} : vector<8x8xi32>
    %40 = arith.cmpi sle, %39, %38 : vector<8x8xi32>
    %41 = vector.extract_strided_slice %37 {offsets = [0, 0], sizes = [8, 8], strides = [1, 1]} : vector<8x96xf32> to vector<8x8xf32>
    %42 = vector.extract_strided_slice %37 {offsets = [0, 32], sizes = [8, 8], strides = [1, 1]} : vector<8x96xf32> to vector<8x8xf32>
    %43 = vector.extract_strided_slice %37 {offsets = [0, 64], sizes = [8, 8], strides = [1, 1]} : vector<8x96xf32> to vector<8x8xf32>
    %44 = arith.truncf %41 : vector<8x8xf32> to vector<8x8xbf16>
    %45 = arith.truncf %42 : vector<8x8xf32> to vector<8x8xbf16>
    %cst_15 = arith.constant dense<0.000000e+00> : vector<8x8xf32>
    %46 = tpu.matmul %44, %45, %cst_15 {dimension_numbers = #tpu.dot_dimension_numbers<[1], [1], [0], [0], [0, 0, 1, 0], [], []>} : vector<8x8xbf16>, vector<8x8xbf16>, vector<8x8xf32> -> vector<8x8xf32>
    %cst_16 = arith.constant -1.000000e+04 : f32
    %47 = vector.broadcast %cst_16 : f32 to vector<8x8xf32>
    %48 = arith.select %40, %46, %47 : vector<8x8xi1>, vector<8x8xf32>
    %cst_17 = arith.constant dense<0xFF800000> : vector<8xf32>
    %49 = vector.multi_reduction <maximumf>, %48, %cst_17 [1] : vector<8x8xf32> to vector<8xf32>
    %50 = vector.shape_cast %49 : vector<8xf32> to vector<8x1xf32>
    %51 = vector.broadcast %50 : vector<8x1xf32> to vector<8x8xf32>
    %52 = arith.subf %48, %51 : vector<8x8xf32>
    %53 = math.exp %52 : vector<8x8xf32>
    %cst_18 = arith.constant dense<0.000000e+00> : vector<8xf32>
    %54 = vector.multi_reduction <add>, %53, %cst_18 [1] : vector<8x8xf32> to vector<8xf32>
    %55 = vector.shape_cast %54 : vector<8xf32> to vector<8x1xf32>
    %56 = tpu.reciprocal %55 {approx = true} : vector<8x1xf32> -> vector<8x1xf32>
    %57 = vector.broadcast %56 : vector<8x1xf32> to vector<8x8xf32>
    %58 = arith.mulf %53, %57 : vector<8x8xf32>
    %59 = arith.truncf %58 : vector<8x8xf32> to vector<8x8xbf16>
    %60 = arith.truncf %43 : vector<8x8xf32> to vector<8x8xbf16>
    %cst_19 = arith.constant dense<0.000000e+00> : vector<8x8xf32>
    %61 = tpu.matmul %59, %60, %cst_19 {dimension_numbers = #tpu.dot_dimension_numbers<[1], [0], [0], [1], [0, 0, 1, 1], [], []>} : vector<8x8xbf16>, vector<8x8xbf16>, vector<8x8xf32> -> vector<8x8xf32>
    %c0_20 = arith.constant 0 : index
    %c0_21 = arith.constant 0 : index
    %62 = vector.load %arg15[%c0_20, %c0_21] : memref<8x32xf32, #tpu.memory_space<vmem>>, vector<8x8xf32>
    tpu.vector_store %arg15[%c0_20, %c0_21], %61 {strides = array<i32>} : memref<8x32xf32, #tpu.memory_space<vmem>>, vector<8x8xf32>,
    %63 = vector.extract_strided_slice %37 {offsets = [0, 8], sizes = [8, 8], strides = [1, 1]} : vector<8x96xf32> to vector<8x8xf32>
    %64 = vector.extract_strided_slice %37 {offsets = [0, 40], sizes = [8, 8], strides = [1, 1]} : vector<8x96xf32> to vector<8x8xf32>
    %65 = vector.extract_strided_slice %37 {offsets = [0, 72], sizes = [8, 8], strides = [1, 1]} : vector<8x96xf32> to vector<8x8xf32>
    %66 = arith.truncf %63 : vector<8x8xf32> to vector<8x8xbf16>
    %67 = arith.truncf %64 : vector<8x8xf32> to vector<8x8xbf16>
    %cst_22 = arith.constant dense<0.000000e+00> : vector<8x8xf32>
    %68 = tpu.matmul %66, %67, %cst_22 {dimension_numbers = #tpu.dot_dimension_numbers<[1], [1], [0], [0], [0, 0, 1, 0], [], []>} : vector<8x8xbf16>, vector<8x8xbf16>, vector<8x8xf32> -> vector<8x8xf32>
    %cst_23 = arith.constant -1.000000e+04 : f32
    %69 = vector.broadcast %cst_23 : f32 to vector<8x8xf32>
    %70 = arith.select %40, %68, %69 : vector<8x8xi1>, vector<8x8xf32>
    %cst_24 = arith.constant dense<0xFF800000> : vector<8xf32>
    %71 = vector.multi_reduction <maximumf>, %70, %cst_24 [1] : vector<8x8xf32> to vector<8xf32>
    %72 = vector.shape_cast %71 : vector<8xf32> to vector<8x1xf32>
    %73 = vector.broadcast %72 : vector<8x1xf32> to vector<8x8xf32>
    %74 = arith.subf %70, %73 : vector<8x8xf32>
    %75 = math.exp %74 : vector<8x8xf32>
    %cst_25 = arith.constant dense<0.000000e+00> : vector<8xf32>
    %76 = vector.multi_reduction <add>, %75, %cst_25 [1] : vector<8x8xf32> to vector<8xf32>
    %77 = vector.shape_cast %76 : vector<8xf32> to vector<8x1xf32>
    %78 = tpu.reciprocal %77 {approx = true} : vector<8x1xf32> -> vector<8x1xf32>
    %79 = vector.broadcast %78 : vector<8x1xf32> to vector<8x8xf32>
    %80 = arith.mulf %75, %79 : vector<8x8xf32>
    %81 = arith.truncf %80 : vector<8x8xf32> to vector<8x8xbf16>
    %82 = arith.truncf %65 : vector<8x8xf32> to vector<8x8xbf16>
    %cst_26 = arith.constant dense<0.000000e+00> : vector<8x8xf32>
    %83 = tpu.matmul %81, %82, %cst_26 {dimension_numbers = #tpu.dot_dimension_numbers<[1], [0], [0], [1], [0, 0, 1, 1], [], []>} : vector<8x8xbf16>, vector<8x8xbf16>, vector<8x8xf32> -> vector<8x8xf32>
    %c0_27 = arith.constant 0 : index
    %c8 = arith.constant 8 : index
    %84 = vector.load %arg15[%c0_27, %c8] : memref<8x32xf32, #tpu.memory_space<vmem>>, vector<8x8xf32>
    tpu.vector_store %arg15[%c0_27, %c8], %83 {strides = array<i32>} : memref<8x32xf32, #tpu.memory_space<vmem>>, vector<8x8xf32>,
    %85 = vector.extract_strided_slice %37 {offsets = [0, 16], sizes = [8, 8], strides = [1, 1]} : vector<8x96xf32> to vector<8x8xf32>
    %86 = vector.extract_strided_slice %37 {offsets = [0, 48], sizes = [8, 8], strides = [1, 1]} : vector<8x96xf32> to vector<8x8xf32>
    %87 = vector.extract_strided_slice %37 {offsets = [0, 80], sizes = [8, 8], strides = [1, 1]} : vector<8x96xf32> to vector<8x8xf32>
    %88 = arith.truncf %85 : vector<8x8xf32> to vector<8x8xbf16>
    %89 = arith.truncf %86 : vector<8x8xf32> to vector<8x8xbf16>
    %cst_28 = arith.constant dense<0.000000e+00> : vector<8x8xf32>
    %90 = tpu.matmul %88, %89, %cst_28 {dimension_numbers = #tpu.dot_dimension_numbers<[1], [1], [0], [0], [0, 0, 1, 0], [], []>} : vector<8x8xbf16>, vector<8x8xbf16>, vector<8x8xf32> -> vector<8x8xf32>
    %cst_29 = arith.constant -1.000000e+04 : f32
    %91 = vector.broadcast %cst_29 : f32 to vector<8x8xf32>
    %92 = arith.select %40, %90, %91 : vector<8x8xi1>, vector<8x8xf32>
    %cst_30 = arith.constant dense<0xFF800000> : vector<8xf32>
    %93 = vector.multi_reduction <maximumf>, %92, %cst_30 [1] : vector<8x8xf32> to vector<8xf32>
    %94 = vector.shape_cast %93 : vector<8xf32> to vector<8x1xf32>
    %95 = vector.broadcast %94 : vector<8x1xf32> to vector<8x8xf32>
    %96 = arith.subf %92, %95 : vector<8x8xf32>
    %97 = math.exp %96 : vector<8x8xf32>
    %cst_31 = arith.constant dense<0.000000e+00> : vector<8xf32>
    %98 = vector.multi_reduction <add>, %97, %cst_31 [1] : vector<8x8xf32> to vector<8xf32>
    %99 = vector.shape_cast %98 : vector<8xf32> to vector<8x1xf32>
    %100 = tpu.reciprocal %99 {approx = true} : vector<8x1xf32> -> vector<8x1xf32>
    %101 = vector.broadcast %100 : vector<8x1xf32> to vector<8x8xf32>
    %102 = arith.mulf %97, %101 : vector<8x8xf32>
    %103 = arith.truncf %102 : vector<8x8xf32> to vector<8x8xbf16>
    %104 = arith.truncf %87 : vector<8x8xf32> to vector<8x8xbf16>
    %cst_32 = arith.constant dense<0.000000e+00> : vector<8x8xf32>
    %105 = tpu.matmul %103, %104, %cst_32 {dimension_numbers = #tpu.dot_dimension_numbers<[1], [0], [0], [1], [0, 0, 1, 1], [], []>} : vector<8x8xbf16>, vector<8x8xbf16>, vector<8x8xf32> -> vector<8x8xf32>
    %c0_33 = arith.constant 0 : index
    %c16 = arith.constant 16 : index
    %106 = vector.load %arg15[%c0_33, %c16] : memref<8x32xf32, #tpu.memory_space<vmem>>, vector<8x8xf32>
    tpu.vector_store %arg15[%c0_33, %c16], %105 {strides = array<i32>} : memref<8x32xf32, #tpu.memory_space<vmem>>, vector<8x8xf32>,
    %107 = vector.extract_strided_slice %37 {offsets = [0, 24], sizes = [8, 8], strides = [1, 1]} : vector<8x96xf32> to vector<8x8xf32>
    %108 = vector.extract_strided_slice %37 {offsets = [0, 56], sizes = [8, 8], strides = [1, 1]} : vector<8x96xf32> to vector<8x8xf32>
    %109 = vector.extract_strided_slice %37 {offsets = [0, 88], sizes = [8, 8], strides = [1, 1]} : vector<8x96xf32> to vector<8x8xf32>
    %110 = arith.truncf %107 : vector<8x8xf32> to vector<8x8xbf16>
    %111 = arith.truncf %108 : vector<8x8xf32> to vector<8x8xbf16>
    %cst_34 = arith.constant dense<0.000000e+00> : vector<8x8xf32>
    %112 = tpu.matmul %110, %111, %cst_34 {dimension_numbers = #tpu.dot_dimension_numbers<[1], [1], [0], [0], [0, 0, 1, 0], [], []>} : vector<8x8xbf16>, vector<8x8xbf16>, vector<8x8xf32> -> vector<8x8xf32>
    %cst_35 = arith.constant -1.000000e+04 : f32
    %113 = vector.broadcast %cst_35 : f32 to vector<8x8xf32>
    %114 = arith.select %40, %112, %113 : vector<8x8xi1>, vector<8x8xf32>
    %cst_36 = arith.constant dense<0xFF800000> : vector<8xf32>
    %115 = vector.multi_reduction <maximumf>, %114, %cst_36 [1] : vector<8x8xf32> to vector<8xf32>
    %116 = vector.shape_cast %115 : vector<8xf32> to vector<8x1xf32>
    %117 = vector.broadcast %116 : vector<8x1xf32> to vector<8x8xf32>
    %118 = arith.subf %114, %117 : vector<8x8xf32>
    %119 = math.exp %118 : vector<8x8xf32>
    %cst_37 = arith.constant dense<0.000000e+00> : vector<8xf32>
    %120 = vector.multi_reduction <add>, %119, %cst_37 [1] : vector<8x8xf32> to vector<8xf32>
    %121 = vector.shape_cast %120 : vector<8xf32> to vector<8x1xf32>
    %122 = tpu.reciprocal %121 {approx = true} : vector<8x1xf32> -> vector<8x1xf32>
    %123 = vector.broadcast %122 : vector<8x1xf32> to vector<8x8xf32>
    %124 = arith.mulf %119, %123 : vector<8x8xf32>
    %125 = arith.truncf %124 : vector<8x8xf32> to vector<8x8xbf16>
    %126 = arith.truncf %109 : vector<8x8xf32> to vector<8x8xbf16>
    %cst_38 = arith.constant dense<0.000000e+00> : vector<8x8xf32>
    %127 = tpu.matmul %125, %126, %cst_38 {dimension_numbers = #tpu.dot_dimension_numbers<[1], [0], [0], [1], [0, 0, 1, 1], [], []>} : vector<8x8xbf16>, vector<8x8xbf16>, vector<8x8xf32> -> vector<8x8xf32>
    %c0_39 = arith.constant 0 : index
    %c24 = arith.constant 24 : index
    %128 = vector.load %arg15[%c0_39, %c24] : memref<8x32xf32, #tpu.memory_space<vmem>>, vector<8x8xf32>
    tpu.vector_store %arg15[%c0_39, %c24], %127 {strides = array<i32>} : memref<8x32xf32, #tpu.memory_space<vmem>>, vector<8x8xf32>,
    %c0_40 = arith.constant 0 : index
    %c0_41 = arith.constant 0 : index
    %129 = vector.load %arg15[%c0_40, %c0_41] : memref<8x32xf32, #tpu.memory_space<vmem>>, vector<8x32xf32>
    %130 = arith.truncf %129 : vector<8x32xf32> to vector<8x32xbf16>
    %c0_42 = arith.constant 0 : index
    %c0_43 = arith.constant 0 : index
    %131 = vector.load %arg6[%c0_42, %c0_43] : memref<32x32xbf16, #tpu.memory_space<vmem>>, vector<32x32xbf16>
    %cst_44 = arith.constant dense<0.000000e+00> : vector<8x32xf32>
    %132 = tpu.matmul %130, %131, %cst_44 {dimension_numbers = #tpu.dot_dimension_numbers<[1], [0], [0], [1], [0, 0, 1, 1], [], []>} : vector<8x32xbf16>, vector<32x32xbf16>, vector<8x32xf32> -> vector<8x32xf32>
    %c0_45 = arith.constant 0 : index
    %c0_46 = arith.constant 0 : index
    %133 = vector.load %arg7[%c0_45, %c0_46] : memref<1x32xf32, #tpu.memory_space<vmem>>, vector<1x32xf32>
    %134 = vector.shape_cast %133 : vector<1x32xf32> to vector<32xf32>
    %135 = vector.shape_cast %134 : vector<32xf32> to vector<1x32xf32>
    %136 = vector.broadcast %135 : vector<1x32xf32> to vector<8x32xf32>
    %137 = arith.addf %132, %136 : vector<8x32xf32>
    %138 = arith.addf %1, %137 : vector<8x32xf32>
    %c0_47 = arith.constant 0 : index
    %c0_48 = arith.constant 0 : index
    %139 = vector.load %arg8[%c0_47, %c0_48] : memref<1x32xf32, #tpu.memory_space<vmem>>, vector<1x32xf32>
    %140 = vector.shape_cast %139 : vector<1x32xf32> to vector<32xf32>
    %c0_49 = arith.constant 0 : index
    %c0_50 = arith.constant 0 : index
    %141 = vector.load %arg9[%c0_49, %c0_50] : memref<1x32xf32, #tpu.memory_space<vmem>>, vector<1x32xf32>
    %142 = vector.shape_cast %141 : vector<1x32xf32> to vector<32xf32>
    %cst_51 = arith.constant dense<0.000000e+00> : vector<8xf32>
    %143 = vector.multi_reduction <add>, %138, %cst_51 [1] : vector<8x32xf32> to vector<8xf32>
    %144 = vector.shape_cast %143 : vector<8xf32> to vector<8x1xf32>
    %cst_52 = arith.constant 3.200000e+01 : f32
    %145 = vector.broadcast %cst_52 : f32 to vector<8x1xf32>
    %146 = arith.divf %144, %145 : vector<8x1xf32>
    %147 = vector.broadcast %146 : vector<8x1xf32> to vector<8x32xf32>
    %148 = arith.subf %138, %147 : vector<8x32xf32>
    %149 = arith.mulf %148, %148 : vector<8x32xf32>
    %cst_53 = arith.constant dense<0.000000e+00> : vector<8xf32>
    %150 = vector.multi_reduction <add>, %149, %cst_53 [1] : vector<8x32xf32> to vector<8xf32>
    %151 = vector.shape_cast %150 : vector<8xf32> to vector<8x1xf32>
    %cst_54 = arith.constant 3.200000e+01 : f32
    %152 = vector.broadcast %cst_54 : f32 to vector<8x1xf32>
    %153 = arith.divf %151, %152 : vector<8x1xf32>
    %154 = vector.broadcast %146 : vector<8x1xf32> to vector<8x32xf32>
    %155 = arith.subf %138, %154 : vector<8x32xf32>
    %cst_55 = arith.constant 9.99999974E-6 : f32
    %156 = vector.broadcast %cst_55 : f32 to vector<8x1xf32>
    %157 = arith.addf %153, %156 : vector<8x1xf32>
    %158 = math.rsqrt %157 : vector<8x1xf32>
    %159 = vector.broadcast %158 : vector<8x1xf32> to vector<8x32xf32>
    %160 = arith.mulf %155, %159 : vector<8x32xf32>
    %161 = vector.shape_cast %140 : vector<32xf32> to vector<1x32xf32>
    %162 = vector.broadcast %161 : vector<1x32xf32> to vector<8x32xf32>
    %163 = arith.mulf %160, %162 : vector<8x32xf32>
    %164 = vector.shape_cast %142 : vector<32xf32> to vector<1x32xf32>
    %165 = vector.broadcast %164 : vector<1x32xf32> to vector<8x32xf32>
    %166 = arith.addf %163, %165 : vector<8x32xf32>
    %167 = arith.truncf %166 : vector<8x32xf32> to vector<8x32xbf16>
    %c0_56 = arith.constant 0 : index
    %c0_57 = arith.constant 0 : index
    %168 = vector.load %arg10[%c0_56, %c0_57] : memref<32x128xbf16, #tpu.memory_space<vmem>>, vector<32x128xbf16>
    %cst_58 = arith.constant dense<0.000000e+00> : vector<8x128xf32>
    %169 = tpu.matmul %167, %168, %cst_58 {dimension_numbers = #tpu.dot_dimension_numbers<[1], [0], [0], [1], [0, 0, 1, 1], [], []>} : vector<8x32xbf16>, vector<32x128xbf16>, vector<8x128xf32> -> vector<8x128xf32>
    %c0_59 = arith.constant 0 : index
    %c0_60 = arith.constant 0 : index
    %170 = vector.load %arg11[%c0_59, %c0_60] : memref<1x128xf32, #tpu.memory_space<vmem>>, vector<1x128xf32>
    %171 = vector.shape_cast %170 : vector<1x128xf32> to vector<128xf32>
    %172 = vector.shape_cast %171 : vector<128xf32> to vector<1x128xf32>
    %173 = vector.broadcast %172 : vector<1x128xf32> to vector<8x128xf32>
    %174 = arith.addf %169, %173 : vector<8x128xf32>
    %175 = arith.mulf %174, %174 : vector<8x128xf32>
    %176 = arith.mulf %174, %175 : vector<8x128xf32>
    %cst_61 = arith.constant 4.471500e-02 : f32
    %177 = vector.broadcast %cst_61 : f32 to vector<8x128xf32>
    %178 = arith.mulf %177, %176 : vector<8x128xf32>
    %179 = arith.addf %174, %178 : vector<8x128xf32>
    %cst_62 = arith.constant 0.797884583 : f32
    %180 = vector.broadcast %cst_62 : f32 to vector<8x128xf32>
    %181 = arith.mulf %180, %179 : vector<8x128xf32>
    %182 = math.tanh %181 : vector<8x128xf32>
    %cst_63 = arith.constant 1.000000e+00 : f32
    %183 = vector.broadcast %cst_63 : f32 to vector<8x128xf32>
    %184 = arith.addf %183, %182 : vector<8x128xf32>
    %cst_64 = arith.constant 5.000000e-01 : f32
    %185 = vector.broadcast %cst_64 : f32 to vector<8x128xf32>
    %186 = arith.mulf %185, %184 : vector<8x128xf32>
    %187 = arith.mulf %174, %186 : vector<8x128xf32>
    %188 = arith.truncf %187 : vector<8x128xf32> to vector<8x128xbf16>
    %c0_65 = arith.constant 0 : index
    %c0_66 = arith.constant 0 : index
    %189 = vector.load %arg12[%c0_65, %c0_66] : memref<128x32xbf16, #tpu.memory_space<vmem>>, vector<128x32xbf16>
    %cst_67 = arith.constant dense<0.000000e+00> : vector<8x32xf32>
    %190 = tpu.matmul %188, %189, %cst_67 {dimension_numbers = #tpu.dot_dimension_numbers<[1], [0], [0], [1], [0, 0, 1, 1], [], []>} : vector<8x128xbf16>, vector<128x32xbf16>, vector<8x32xf32> -> vector<8x32xf32>
    %c0_68 = arith.constant 0 : index
    %c0_69 = arith.constant 0 : index
    %191 = vector.load %arg13[%c0_68, %c0_69] : memref<1x32xf32, #tpu.memory_space<vmem>>, vector<1x32xf32>
    %192 = vector.shape_cast %191 : vector<1x32xf32> to vector<32xf32>
    %193 = vector.shape_cast %192 : vector<32xf32> to vector<1x32xf32>
    %194 = vector.broadcast %193 : vector<1x32xf32> to vector<8x32xf32>
    %195 = arith.addf %190, %194 : vector<8x32xf32>
    %196 = arith.addf %138, %195 : vector<8x32xf32>
    %c0_70 = arith.constant 0 : index
    %c0_71 = arith.constant 0 : index
    %c0_72 = arith.constant 0 : index
    %197 = vector.load %arg14[%c0_70, %c0_71, %c0_72] : memref<1x8x32xf32, #tpu.memory_space<vmem>>, vector<1x8x32xf32>
    %198 = vector.shape_cast %197 : vector<1x8x32xf32> to vector<8x32xf32>
    %199 = vector.shape_cast %196 : vector<8x32xf32> to vector<1x8x32xf32>
    tpu.vector_store %arg14[%c0_70, %c0_71, %c0_72], %199 {strides = array<i32>} : memref<1x8x32xf32, #tpu.memory_space<vmem>>, vector<1x8x32xf32>,
    return
  }
  func.func @transform_0(%arg0: i32) -> (i32, i32, i32) {
    %c0_i32 = arith.constant 0 : i32
    %c0_i32_0 = arith.constant 0 : i32
    %c0_i32_1 = arith.constant 0 : i32
    return %arg0, %c0_i32, %c0_i32_0 : i32, i32, i32
  }
  func.func @transform_1(%arg0: i32) -> (i32, i32) {
    %c0_i32 = arith.constant 0 : i32
    %c0_i32_0 = arith.constant 0 : i32
    %c0_i32_1 = arith.constant 0 : i32
    return %c0_i32, %c0_i32_0 : i32, i32
  }
  func.func @transform_2(%arg0: i32) -> (i32, i32) {
    %c0_i32 = arith.constant 0 : i32
    %c0_i32_0 = arith.constant 0 : i32
    %c0_i32_1 = arith.constant 0 : i32
    return %c0_i32, %c0_i32_0 : i32, i32
  }
  func.func @transform_3(%arg0: i32) -> (i32, i32) {
    %c0_i32 = arith.constant 0 : i32
    %c0_i32_0 = arith.constant 0 : i32
    %c0_i32_1 = arith.constant 0 : i32
    return %c0_i32, %c0_i32_0 : i32, i32
  }
  func.func @transform_4(%arg0: i32) -> (i32, i32) {
    %c0_i32 = arith.constant 0 : i32
    %c0_i32_0 = arith.constant 0 : i32
    %c0_i32_1 = arith.constant 0 : i32
    return %c0_i32, %c0_i32_0 : i32, i32
  }
  func.func @transform_5(%arg0: i32) -> (i32, i32) {
    %c0_i32 = arith.constant 0 : i32
    %c0_i32_0 = arith.constant 0 : i32
    %c0_i32_1 = arith.constant 0 : i32
    return %c0_i32, %c0_i32_0 : i32, i32
  }
  func.func @transform_6(%arg0: i32) -> (i32, i32) {
    %c0_i32 = arith.constant 0 : i32
    %c0_i32_0 = arith.constant 0 : i32
    %c0_i32_1 = arith.constant 0 : i32
    return %c0_i32, %c0_i32_0 : i32, i32
  }
  func.func @transform_7(%arg0: i32) -> (i32, i32) {
    %c0_i32 = arith.constant 0 : i32
    %c0_i32_0 = arith.constant 0 : i32
    %c0_i32_1 = arith.constant 0 : i32
    return %c0_i32, %c0_i32_0 : i32, i32
  }
  func.func @transform_8(%arg0: i32) -> (i32, i32) {
    %c0_i32 = arith.constant 0 : i32
    %c0_i32_0 = arith.constant 0 : i32
    %c0_i32_1 = arith.constant 0 : i32
    return %c0_i32, %c0_i32_0 : i32, i32
  }
  func.func @transform_9(%arg0: i32) -> (i32, i32) {
    %c0_i32 = arith.constant 0 : i32
    %c0_i32_0 = arith.constant 0 : i32
    %c0_i32_1 = arith.constant 0 : i32
    return %c0_i32, %c0_i32_0 : i32, i32
  }
  func.func @transform_10(%arg0: i32) -> (i32, i32) {
    %c0_i32 = arith.constant 0 : i32
    %c0_i32_0 = arith.constant 0 : i32
    %c0_i32_1 = arith.constant 0 : i32
    return %c0_i32, %c0_i32_0 : i32, i32
  }
  func.func @transform_11(%arg0: i32) -> (i32, i32) {
    %c0_i32 = arith.constant 0 : i32
    %c0_i32_0 = arith.constant 0 : i32
    %c0_i32_1 = arith.constant 0 : i32
    return %c0_i32, %c0_i32_0 : i32, i32
  }
  func.func @transform_12(%arg0: i32) -> (i32, i32) {
    %c0_i32 = arith.constant 0 : i32
    %c0_i32_0 = arith.constant 0 : i32
    %c0_i32_1 = arith.constant 0 : i32
    return %c0_i32, %c0_i32_0 : i32, i32
  }
  func.func @transform_13(%arg0: i32) -> (i32, i32, i32) {
    %c0_i32 = arith.constant 0 : i32
    %c0_i32_0 = arith.constant 0 : i32
    %c0_i32_1 = arith.constant 0 : i32
    return %arg0, %c0_i32, %c0_i32_0 : i32, i32, i32
  }
}

</mosaic_0001>

<llo_original>
// kernel: tpu_custom_call.1
$region0: #{tpu_custom_call.1}
  #allocation0 [shape = 'u32[]', space=smem, size = 0x4, offset = 0x4, fixed_abs, tag = 'smem constant byte address 0x4 - core index']
  #allocation1 [shape = 'u32[72,128]{1,0:T(1,128)}', space=vmem, size = 0x9000, scoped, tag = 'internal scratch']
  #allocation2 [shape = 'f32[8,32]{1,0:T(8,128)}', space=vmem, size = 0x1000, scoped, tag = 'scratch operand']
  %s0 = inlined_call_operand.vmem [shape: f32[2,8,32], index: 0, kind: input, shape index: {}]
  %s1 = inlined_call_operand.vmem [shape: f32[1,32], index: 1, kind: input, shape index: {}]
  %s2 = inlined_call_operand.vmem [shape: f32[1,32], index: 2, kind: input, shape index: {}]
  %s3 = inlined_call_operand.vmem [shape: bf16[32,96], index: 3, kind: input, shape index: {}]
  %s4 = inlined_call_operand.vmem [shape: f32[1,96], index: 4, kind: input, shape index: {}]
  %s5 = inlined_call_operand.vmem [shape: bf16[32,32], index: 5, kind: input, shape index: {}]
  %s6 = inlined_call_operand.vmem [shape: f32[1,32], index: 6, kind: input, shape index: {}]
  %s7 = inlined_call_operand.vmem [shape: f32[1,32], index: 7, kind: input, shape index: {}]
  %s8 = inlined_call_operand.vmem [shape: f32[1,32], index: 8, kind: input, shape index: {}]
  %s9 = inlined_call_operand.vmem [shape: bf16[32,128], index: 9, kind: input, shape index: {}]
  %s10 = inlined_call_operand.vmem [shape: f32[1,128], index: 10, kind: input, shape index: {}]
  %s11 = inlined_call_operand.vmem [shape: bf16[128,32], index: 11, kind: input, shape index: {}]
  %s12 = inlined_call_operand.vmem [shape: f32[1,32], index: 12, kind: input, shape index: {}]
  %s13 = inlined_call_operand.hbm [shape: f32[2,8,32], index: 13, kind: output, shape index: {}]
  %s14 = sld [smem:[#allocation0]]
  $region85: #{tpu_custom_call.1} parent=0
    _
  %s16 = ssub.s32 1, %s14
  %s17 = scalar_select 0, %s16, %s14
  $region1: #{tpu_custom_call.1} parent=0
    #allocation3 [shape = 'u8[8192]{0}', space=vmem, size = 0x2000, scoped, tag = 'output window, operand 0']
    #allocation4 [shape = 's32[2]{0}', space=sflag, size = 0x8, scoped, tag = 'scoped memory for tpu_custom_call.1']
    %18 = vsyncpa [#allocation4], 0
    %s19 = scalar_lea.sflag [#allocation4], 1
    %20 = vsyncpa %s19, 0
    loop: start=0, step=1, limit=4
    $region2: #{tpu_custom_call.1} parent=1 // loop_pre_header
      _
    $region3: #{tpu_custom_call.1} parent=1 // loop_header
      %s22 = sphi 0, %s26
      %p23 = scmp.ge.s32.totalorder %s22, 4
      %s32 = sphi 0, %s34
      %s35 = sphi 0, %s32
      %s36 = sphi 0, %s35
      %s52 = sphi 0, %s36
      %s56 = sphi 0, %s56
      %s58 = sphi 0, %s56
      %s59 = sphi 0, %s58
      %s73 = sphi 0, %s59
      %s77 = sphi 0, %s77
      %s79 = sphi 0, %s77
      %s80 = sphi 0, %s79
      %s94 = sphi 0, %s80
      %s98 = sphi 0, %s98
      %s100 = sphi 0, %s98
      %s101 = sphi 0, %s100
      %s115 = sphi 0, %s101
      %s119 = sphi 0, %s119
      %s121 = sphi 0, %s119
      %s122 = sphi 0, %s121
      %s136 = sphi 0, %s122
      %s140 = sphi 0, %s140
      %s142 = sphi 0, %s140
      %s143 = sphi 0, %s142
      %s157 = sphi 0, %s143
      %s161 = sphi 0, %s161
      %s163 = sphi 0, %s161
      %s164 = sphi 0, %s163
      %s178 = sphi 0, %s164
      %s182 = sphi 0, %s182
      %s184 = sphi 0, %s182
      %s185 = sphi 0, %s184
      %s199 = sphi 0, %s185
      %s203 = sphi 0, %s203
      %s205 = sphi 0, %s203
      %s206 = sphi 0, %s205
      %s220 = sphi 0, %s206
      %s224 = sphi 0, %s224
      %s226 = sphi 0, %s224
      %s227 = sphi 0, %s226
      %s241 = sphi 0, %s227
      %s245 = sphi 0, %s245
      %s247 = sphi 0, %s245
      %s248 = sphi 0, %s247
      %s262 = sphi 0, %s248
      %s266 = sphi 0, %s266
      %s268 = sphi 0, %s266
      %s269 = sphi 0, %s268
      %s283 = sphi 0, %s269
      %s287 = sphi 0, %s287
      %s289 = sphi 0, %s287
      %s290 = sphi 0, %s289
      %s304 = sphi 0, %s290
      %s310 = sphi 0, %s312
      %s313 = sphi 0, %s310
      %s314 = sphi 0, %s313
      %s330 = sphi 0, %s314
    $region4: #{tpu_custom_call.1} parent=1 // loop_header_branch
      %25 = sbr.rel (%p23) target = $region8
    $region5: #{tpu_custom_call.1} parent=1 // loop_body
      %s27 = ssub.s32 %s22, 1
      %s28 = ssub.s32 %s22, 2
      %s29 = sadd.s32 %s22, 1
      %s30 = ssub.s32 %s22, %s29
      %p31 = scmp.eq.s32.totalorder %s30, 0
      %s33 = sadd.s32 %s32, 1
      %s34 = scalar_select %p31, %s32, %s33
      %p37 = pneg %p31
      %p38 = scmp.eq.s32.totalorder %s22, 1
      %p39 = por %p37, %p38
      %p40 = scmp.ne.s32.totalorder %s32, %s35
      %p41 = scmp.eq.s32.totalorder %s22, 0
      %p42 = por %p40, %p41
      %p43 = scmp.ne.s32.totalorder %s32, %s35
      %p44 = scmp.eq.s32.totalorder %s27, 1
      %p45 = por %p43, %p44
      %p46 = scmp.ne.s32.totalorder %s35, %s36
      %p47 = scmp.eq.s32.totalorder %s27, 0
      %p48 = por %p46, %p47
      %p49 = scmp.ne.s32.totalorder %s35, %s36
      %p50 = scmp.eq.s32.totalorder %s28, 1
      %p51 = por %p49, %p50
      %p53 = scmp.ne.s32.totalorder %s36, %s52
      %p54 = scmp.eq.s32.totalorder %s28, 0
      %p55 = por %p53, %p54
      %s57 = sadd.s32 %s56, 1
      %p60 = scmp.eq.s32.totalorder %s22, 1
      %p61 = scmp.ne.s32.totalorder %s56, %s58
      %p62 = scmp.eq.s32.totalorder %s22, 0
      %p63 = por %p61, %p62
      %p64 = scmp.ne.s32.totalorder %s56, %s58
      %p65 = scmp.eq.s32.totalorder %s27, 1
      %p66 = por %p64, %p65
      %p67 = scmp.ne.s32.totalorder %s58, %s59
      %p68 = scmp.eq.s32.totalorder %s27, 0
      %p69 = por %p67, %p68
      %p70 = scmp.ne.s32.totalorder %s58, %s59
      %p71 = scmp.eq.s32.totalorder %s28, 1
      %p72 = por %p70, %p71
      %p74 = scmp.ne.s32.totalorder %s59, %s73
      %p75 = scmp.eq.s32.totalorder %s28, 0
      %p76 = por %p74, %p75
      %s78 = sadd.s32 %s77, 1
      %p81 = scmp.eq.s32.totalorder %s22, 1
      %p82 = scmp.ne.s32.totalorder %s77, %s79
      %p83 = scmp.eq.s32.totalorder %s22, 0
      %p84 = por %p82, %p83
      %p85 = scmp.ne.s32.totalorder %s77, %s79
      %p86 = scmp.eq.s32.totalorder %s27, 1
      %p87 = por %p85, %p86
      %p88 = scmp.ne.s32.totalorder %s79, %s80
      %p89 = scmp.eq.s32.totalorder %s27, 0
      %p90 = por %p88, %p89
      %p91 = scmp.ne.s32.totalorder %s79, %s80
      %p92 = scmp.eq.s32.totalorder %s28, 1
      %p93 = por %p91, %p92
      %p95 = scmp.ne.s32.totalorder %s80, %s94
      %p96 = scmp.eq.s32.totalorder %s28, 0
      %p97 = por %p95, %p96
      %s99 = sadd.s32 %s98, 1
      %p102 = scmp.eq.s32.totalorder %s22, 1
      %p103 = scmp.ne.s32.totalorder %s98, %s100
      %p104 = scmp.eq.s32.totalorder %s22, 0
      %p105 = por %p103, %p104
      %p106 = scmp.ne.s32.totalorder %s98, %s100
      %p107 = scmp.eq.s32.totalorder %s27, 1
      %p108 = por %p106, %p107
      %p109 = scmp.ne.s32.totalorder %s100, %s101
      %p110 = scmp.eq.s32.totalorder %s27, 0
      %p111 = por %p109, %p110
      %p112 = scmp.ne.s32.totalorder %s100, %s101
      %p113 = scmp.eq.s32.totalorder %s28, 1
      %p114 = por %p112, %p113
      %p116 = scmp.ne.s32.totalorder %s101, %s115
      %p117 = scmp.eq.s32.totalorder %s28, 0
      %p118 = por %p116, %p117
      %s120 = sadd.s32 %s119, 1
      %p123 = scmp.eq.s32.totalorder %s22, 1
      %p124 = scmp.ne.s32.totalorder %s119, %s121
      %p125 = scmp.eq.s32.totalorder %s22, 0
      %p126 = por %p124, %p125
      %p127 = scmp.ne.s32.totalorder %s119, %s121
      %p128 = scmp.eq.s32.totalorder %s27, 1
      %p129 = por %p127, %p128
      %p130 = scmp.ne.s32.totalorder %s121, %s122
      %p131 = scmp.eq.s32.totalorder %s27, 0
      %p132 = por %p130, %p131
      %p133 = scmp.ne.s32.totalorder %s121, %s122
      %p134 = scmp.eq.s32.totalorder %s28, 1
      %p135 = por %p133, %p134
      %p137 = scmp.ne.s32.totalorder %s122, %s136
      %p138 = scmp.eq.s32.totalorder %s28, 0
      %p139 = por %p137, %p138
      %s141 = sadd.s32 %s140, 1
      %p144 = scmp.eq.s32.totalorder %s22, 1
      %p145 = scmp.ne.s32.totalorder %s140, %s142
      %p146 = scmp.eq.s32.totalorder %s22, 0
      %p147 = por %p145, %p146
      %p148 = scmp.ne.s32.totalorder %s140, %s142
      %p149 = scmp.eq.s32.totalorder %s27, 1
      %p150 = por %p148, %p149
      %p151 = scmp.ne.s32.totalorder %s142, %s143
      %p152 = scmp.eq.s32.totalorder %s27, 0
      %p153 = por %p151, %p152
      %p154 = scmp.ne.s32.totalorder %s142, %s143
      %p155 = scmp.eq.s32.totalorder %s28, 1
      %p156 = por %p154, %p155
      %p158 = scmp.ne.s32.totalorder %s143, %s157
      %p159 = scmp.eq.s32.totalorder %s28, 0
      %p160 = por %p158, %p159
      %s162 = sadd.s32 %s161, 1
      %p165 = scmp.eq.s32.totalorder %s22, 1
      %p166 = scmp.ne.s32.totalorder %s161, %s163
      %p167 = scmp.eq.s32.totalorder %s22, 0
      %p168 = por %p166, %p167
      %p169 = scmp.ne.s32.totalorder %s161, %s163
      %p170 = scmp.eq.s32.totalorder %s27, 1
      %p171 = por %p169, %p170
      %p172 = scmp.ne.s32.totalorder %s163, %s164
      %p173 = scmp.eq.s32.totalorder %s27, 0
      %p174 = por %p172, %p173
      %p175 = scmp.ne.s32.totalorder %s163, %s164
      %p176 = scmp.eq.s32.totalorder %s28, 1
      %p177 = por %p175, %p176
      %p179 = scmp.ne.s32.totalorder %s164, %s178
      %p180 = scmp.eq.s32.totalorder %s28, 0
      %p181 = por %p179, %p180
      %s183 = sadd.s32 %s182, 1
      %p186 = scmp.eq.s32.totalorder %s22, 1
      %p187 = scmp.ne.s32.totalorder %s182, %s184
      %p188 = scmp.eq.s32.totalorder %s22, 0
      %p189 = por %p187, %p188
      %p190 = scmp.ne.s32.totalorder %s182, %s184
      %p191 = scmp.eq.s32.totalorder %s27, 1
      %p192 = por %p190, %p191
      %p193 = scmp.ne.s32.totalorder %s184, %s185
      %p194 = scmp.eq.s32.totalorder %s27, 0
      %p195 = por %p193, %p194
      %p196 = scmp.ne.s32.totalorder %s184, %s185
      %p197 = scmp.eq.s32.totalorder %s28, 1
      %p198 = por %p196, %p197
      %p200 = scmp.ne.s32.totalorder %s185, %s199
      %p201 = scmp.eq.s32.totalorder %s28, 0
      %p202 = por %p200, %p201
      %s204 = sadd.s32 %s203, 1
      %p207 = scmp.eq.s32.totalorder %s22, 1
      %p208 = scmp.ne.s32.totalorder %s203, %s205
      %p209 = scmp.eq.s32.totalorder %s22, 0
      %p210 = por %p208, %p209
      %p211 = scmp.ne.s32.totalorder %s203, %s205
      %p212 = scmp.eq.s32.totalorder %s27, 1
      %p213 = por %p211, %p212
      %p214 = scmp.ne.s32.totalorder %s205, %s206
      %p215 = scmp.eq.s32.totalorder %s27, 0
      %p216 = por %p214, %p215
      %p217 = scmp.ne.s32.totalorder %s205, %s206
      %p218 = scmp.eq.s32.totalorder %s28, 1
      %p219 = por %p217, %p218
      %p221 = scmp.ne.s32.totalorder %s206, %s220
      %p222 = scmp.eq.s32.totalorder %s28, 0
      %p223 = por %p221, %p222
      %s225 = sadd.s32 %s224, 1
      %p228 = scmp.eq.s32.totalorder %s22, 1
      %p229 = scmp.ne.s32.totalorder %s224, %s226
      %p230 = scmp.eq.s32.totalorder %s22, 0
      %p231 = por %p229, %p230
      %p232 = scmp.ne.s32.totalorder %s224, %s226
      %p233 = scmp.eq.s32.totalorder %s27, 1
      %p234 = por %p232, %p233
      %p235 = scmp.ne.s32.totalorder %s226, %s227
      %p236 = scmp.eq.s32.totalorder %s27, 0
      %p237 = por %p235, %p236
      %p238 = scmp.ne.s32.totalorder %s226, %s227
      %p239 = scmp.eq.s32.totalorder %s28, 1
      %p240 = por %p238, %p239
      %p242 = scmp.ne.s32.totalorder %s227, %s241
      %p243 = scmp.eq.s32.totalorder %s28, 0
      %p244 = por %p242, %p243
      %s246 = sadd.s32 %s245, 1
      %p249 = scmp.eq.s32.totalorder %s22, 1
      %p250 = scmp.ne.s32.totalorder %s245, %s247
      %p251 = scmp.eq.s32.totalorder %s22, 0
      %p252 = por %p250, %p251
      %p253 = scmp.ne.s32.totalorder %s245, %s247
      %p254 = scmp.eq.s32.totalorder %s27, 1
      %p255 = por %p253, %p254
      %p256 = scmp.ne.s32.totalorder %s247, %s248
      %p257 = scmp.eq.s32.totalorder %s27, 0
      %p258 = por %p256, %p257
      %p259 = scmp.ne.s32.totalorder %s247, %s248
      %p260 = scmp.eq.s32.totalorder %s28, 1
      %p261 = por %p259, %p260
      %p263 = scmp.ne.s32.totalorder %s248, %s262
      %p264 = scmp.eq.s32.totalorder %s28, 0
      %p265 = por %p263, %p264
      %s267 = sadd.s32 %s266, 1
      %p270 = scmp.eq.s32.totalorder %s22, 1
      %p271 = scmp.ne.s32.totalorder %s266, %s268
      %p272 = scmp.eq.s32.totalorder %s22, 0
      %p273 = por %p271, %p272
      %p274 = scmp.ne.s32.totalorder %s266, %s268
      %p275 = scmp.eq.s32.totalorder %s27, 1
      %p276 = por %p274, %p275
      %p277 = scmp.ne.s32.totalorder %s268, %s269
      %p278 = scmp.eq.s32.totalorder %s27, 0
      %p279 = por %p277, %p278
      %p280 = scmp.ne.s32.totalorder %s268, %s269
      %p281 = scmp.eq.s32.totalorder %s28, 1
      %p282 = por %p280, %p281
      %p284 = scmp.ne.s32.totalorder %s269, %s283
      %p285 = scmp.eq.s32.totalorder %s28, 0
      %p286 = por %p284, %p285
      %s288 = sadd.s32 %s287, 1
      %p291 = scmp.eq.s32.totalorder %s22, 1
      %p292 = scmp.ne.s32.totalorder %s287, %s289
      %p293 = scmp.eq.s32.totalorder %s22, 0
      %p294 = por %p292, %p293
      %p295 = scmp.ne.s32.totalorder %s287, %s289
      %p296 = scmp.eq.s32.totalorder %s27, 1
      %p297 = por %p295, %p296
      %p298 = scmp.ne.s32.totalorder %s289, %s290
      %p299 = scmp.eq.s32.totalorder %s27, 0
      %p300 = por %p298, %p299
      %p301 = scmp.ne.s32.totalorder %s289, %s290
      %p302 = scmp.eq.s32.totalorder %s28, 1
      %p303 = por %p301, %p302
      %p305 = scmp.ne.s32.totalorder %s290, %s304
      %p306 = scmp.eq.s32.totalorder %s28, 0
      %p307 = por %p305, %p306
      %s308 = ssub.s32 %s22, %s29
      %p309 = scmp.eq.s32.totalorder %s308, 0
      %s311 = sadd.s32 %s310, 1
      %s312 = scalar_select %p309, %s310, %s311
      %p315 = pneg %p309
      %p316 = scmp.eq.s32.totalorder %s22, 1
      %p317 = por %p315, %p316
      %p318 = scmp.ne.s32.totalorder %s310, %s313
      %p319 = scmp.eq.s32.totalorder %s22, 0
      %p320 = por %p318, %p319
      %p321 = scmp.ne.s32.totalorder %s310, %s313
      %p322 = scmp.eq.s32.totalorder %s27, 1
      %p323 = por %p321, %p322
      %p324 = scmp.ne.s32.totalorder %s313, %s314
      %p325 = scmp.eq.s32.totalorder %s27, 0
      %p326 = por %p324, %p325
      %p327 = scmp.ne.s32.totalorder %s313, %s314
      %p328 = scmp.eq.s32.totalorder %s28, 1
      %p329 = por %p327, %p328
      %p331 = scmp.ne.s32.totalorder %s314, %s330
      %p332 = scmp.eq.s32.totalorder %s28, 0
      %p333 = por %p331, %p332
      %p334 = scmp.le.s32.totalorder 1, %s22
      %p335 = scmp.lt.s32.totalorder %s22, 3
      %p336 = pnand %p334, %p335
      %p337 = pneg %p336
      // Predicated region
      $region9: #{tpu_custom_call.1} parent=5 // pred_check
        _
      $region10: #{tpu_custom_call.1} parent=5 // pred_check_branch
        %339 = sbr.rel (%p336) target = $region12
      $region11: #{tpu_custom_call.1} parent=5 // pred_region
        %s340 = ssub.s32 %s22, 1
        // Predicated region
        $region13: #{tpu_custom_call.1} parent=11 // pred_check
          %p341 = pneg %p69
        $region14: #{tpu_custom_call.1} parent=11 // pred_check_branch
          %343 = sbr.rel (%p341) target = $region16
        $region15: #{tpu_custom_call.1} parent=11 // pred_region
          _
        $region16: #{tpu_custom_call.1} parent=11 // pred_fallthru
          _
        // Predicated region
        $region17: #{tpu_custom_call.1} parent=11 // pred_check
          %p344 = pneg %p90
        $region18: #{tpu_custom_call.1} parent=11 // pred_check_branch
          %346 = sbr.rel (%p344) target = $region20
        $region19: #{tpu_custom_call.1} parent=11 // pred_region
          _
        $region20: #{tpu_custom_call.1} parent=11 // pred_fallthru
          _
        // Predicated region
        $region21: #{tpu_custom_call.1} parent=11 // pred_check
          %p347 = pneg %p111
        $region22: #{tpu_custom_call.1} parent=11 // pred_check_branch
          %349 = sbr.rel (%p347) target = $region24
        $region23: #{tpu_custom_call.1} parent=11 // pred_region
          _
        $region24: #{tpu_custom_call.1} parent=11 // pred_fallthru
          _
        // Predicated region
        $region25: #{tpu_custom_call.1} parent=11 // pred_check
          %p350 = pneg %p132
        $region26: #{tpu_custom_call.1} parent=11 // pred_check_branch
          %352 = sbr.rel (%p350) target = $region28
        $region27: #{tpu_custom_call.1} parent=11 // pred_region
          _
        $region28: #{tpu_custom_call.1} parent=11 // pred_fallthru
          _
        // Predicated region
        $region29: #{tpu_custom_call.1} parent=11 // pred_check
          %p353 = pneg %p153
        $region30: #{tpu_custom_call.1} parent=11 // pred_check_branch
          %355 = sbr.rel (%p353) target = $region32
        $region31: #{tpu_custom_call.1} parent=11 // pred_region
          _
        $region32: #{tpu_custom_call.1} parent=11 // pred_fallthru
          _
        // Predicated region
        $region33: #{tpu_custom_call.1} parent=11 // pred_check
          %p356 = pneg %p174
        $region34: #{tpu_custom_call.1} parent=11 // pred_check_branch
          %358 = sbr.rel (%p356) target = $region36
        $region35: #{tpu_custom_call.1} parent=11 // pred_region
          _
        $region36: #{tpu_custom_call.1} parent=11 // pred_fallthru
          _
        // Predicated region
        $region37: #{tpu_custom_call.1} parent=11 // pred_check
          %p359 = pneg %p195
        $region38: #{tpu_custom_call.1} parent=11 // pred_check_branch
          %361 = sbr.rel (%p359) target = $region40
        $region39: #{tpu_custom_call.1} parent=11 // pred_region
          _
        $region40: #{tpu_custom_call.1} parent=11 // pred_fallthru
          _
        // Predicated region
        $region41: #{tpu_custom_call.1} parent=11 // pred_check
          %p362 = pneg %p216
        $region42: #{tpu_custom_call.1} parent=11 // pred_check_branch
          %364 = sbr.rel (%p362) target = $region44
        $region43: #{tpu_custom_call.1} parent=11 // pred_region
          _
        $region44: #{tpu_custom_call.1} parent=11 // pred_fallthru
          _
        // Predicated region
        $region45: #{tpu_custom_call.1} parent=11 // pred_check
          %p365 = pneg %p237
        $region46: #{tpu_custom_call.1} parent=11 // pred_check_branch
          %367 = sbr.rel (%p365) target = $region48
        $region47: #{tpu_custom_call.1} parent=11 // pred_region
          _
        $region48: #{tpu_custom_call.1} parent=11 // pred_fallthru
          _
        // Predicated region
        $region49: #{tpu_custom_call.1} parent=11 // pred_check
          %p368 = pneg %p258
        $region50: #{tpu_custom_call.1} parent=11 // pred_check_branch
          %370 = sbr.rel (%p368) target = $region52
        $region51: #{tpu_custom_call.1} parent=11 // pred_region
          _
        $region52: #{tpu_custom_call.1} parent=11 // pred_fallthru
          _
        // Predicated region
        $region53: #{tpu_custom_call.1} parent=11 // pred_check
          %p371 = pneg %p279
        $region54: #{tpu_custom_call.1} parent=11 // pred_check_branch
          %373 = sbr.rel (%p371) target = $region56
        $region55: #{tpu_custom_call.1} parent=11 // pred_region
          _
        $region56: #{tpu_custom_call.1} parent=11 // pred_fallthru
          _
        // Predicated region
        $region57: #{tpu_custom_call.1} parent=11 // pred_check
          %p374 = pneg %p300
        $region58: #{tpu_custom_call.1} parent=11 // pred_check_branch
          %376 = sbr.rel (%p374) target = $region60
        $region59: #{tpu_custom_call.1} parent=11 // pred_region
          _
        $region60: #{tpu_custom_call.1} parent=11 // pred_fallthru
          _
      $region12: #{tpu_custom_call.1} parent=5 // pred_fallthru
        _
      %p377 = scmp.lt.s32.totalorder %s22, 2
      // Predicated region
      $region61: #{tpu_custom_call.1} parent=5 // pred_check
        %p378 = pneg %p377
      $region62: #{tpu_custom_call.1} parent=5 // pred_check_branch
        %380 = sbr.rel (%p378) target = $region64
      $region63: #{tpu_custom_call.1} parent=5 // pred_region
        // Predicated region
        $region65: #{tpu_custom_call.1} parent=63 // pred_check
          %p381 = pneg %p42
        $region66: #{tpu_custom_call.1} parent=63 // pred_check_branch
          %383 = sbr.rel (%p381) target = $region68
        $region67: #{tpu_custom_call.1} parent=63 // pred_region
          %p384 = scmp.lt.s32.totalorder %s22, 1
          %s385 = scalar_select %p384, %s22, 1
          %s386 = smul.addr %s385, 8
          %s387 = scalar_lea.vmem %s0, %s386
        $region68: #{tpu_custom_call.1} parent=63 // pred_fallthru
          _
      $region64: #{tpu_custom_call.1} parent=5 // pred_fallthru
        _
      %p388 = scmp.le.s32.totalorder 1, %s22
      %p389 = scmp.lt.s32.totalorder %s22, 3
      %p390 = pnand %p388, %p389
      %p391 = pneg %p390
      // Predicated region
      $region69: #{tpu_custom_call.1} parent=5 // pred_check
        _
      $region70: #{tpu_custom_call.1} parent=5 // pred_check_branch
        %393 = sbr.rel (%p390) target = $region72
      $region71: #{tpu_custom_call.1} parent=5 // pred_region
        %s394 = ssub.s32 %s22, 1
        %p395 = scmp.lt.s32.totalorder %s27, 1
        %s396 = scalar_select %p395, %s27, 1
        %s397 = smul.addr %s396, 8
        %s398 = scalar_lea.vmem %s0, %s397
        %p399 = pneg %p48
        %p400 = pneg %p45
        %p401 = pneg %p69
        %p402 = pneg %p66
        %p403 = pneg %p90
        %p404 = pneg %p87
        %p405 = pneg %p111
        %p406 = pneg %p108
        %p407 = pneg %p132
        %p408 = pneg %p129
        %p409 = pneg %p153
        %p410 = pneg %p150
        %p411 = pneg %p174
        %p412 = pneg %p171
        %p413 = pneg %p195
        %p414 = pneg %p192
        %p415 = pneg %p216
        %p416 = pneg %p213
        %p417 = pneg %p237
        %p418 = pneg %p234
        %p419 = pneg %p258
        %p420 = pneg %p255
        %p421 = pneg %p279
        %p422 = pneg %p276
        %p423 = pneg %p300
        %p424 = pneg %p297
        %p425 = pneg %p326
        %p426 = pneg %p323
        %s427 = sand.u32 %s313, 1
        %s428 = scalar_lea.sflag [#allocation4], %s427
        %s429 = sand.u32 %s313, 1
        %s430 = smul.addr %s429, 8
        %s431 = scalar_lea.vmem [#allocation3], %s430
        %p432 = scmp.lt.s32.totalorder %s27, 1
        %s433 = scalar_select %p432, %s27, 1
        %s434 = smul.addr %s433, 8
        %s435 = scalar_lea.vmem %s0, %s434
        %v437 = vld [vmem:[%s435] sm:$0xff]
        %v438 = vld [vmem:[%s1] sm:$0x1]
        %v439 = vld [vmem:[%s2] sm:$0x1]
        %vm440 = vcmask 261120
        %v441 = vsel %vm440, %v437, 0.0
        %442 = vadd.xlane.f32.xlu0 %v441
        %v443 = vpop.xlane.xlu0 %442
        %v444 = vrcp.pop 32.0
        %v445 = vmul.f32 32.0, %v444
        %v446 = vsub.f32 1.0, %v445
        %v447 = vmul.f32 %v444, %v446
        %v448 = vadd.f32 %v444, %v447
        %vm449 = vweird.f32 %v444
        %v450 = vsel %vm449, %v444, %v448
        %v451 = vmul.f32 %v443, %v450
        %v452 = vsub.f32 %v437, %v451
        %v453 = vmul.f32 %v452, %v452
        %v454 = vsel %vm440, %v453, 0.0
        %455 = vadd.xlane.f32.xlu0 %v454
        %v456 = vpop.xlane.xlu0 %455
        %v457 = vmul.f32 %v456, %v450
        %v458 = vadd.f32 %v457, 1e-05
        %v459 = vrsqrt.pop %v458
        %v460 = vmul.f32 %v459, %v458
        %v461 = vmul.f32 %v460, %v459
        %v462 = vmul.f32 0.5, %v461
        %v463 = vsub.f32 1.5, %v462
        %v464 = vmul.f32 %v459, %v463
        %vm465 = vweird.f32 %v458
        %vm466 = vweird.f32 %v459
        %vm467 = vmor %vm465, %vm466
        %v468 = vsel %vm467, %v459, %v464
        %v469 = vmul.f32 %v452, %v468
        %v471 = vperm.slane %v438, 0
        %v473 = vmul.f32 %v469, %v471
        %v475 = vperm.slane %v439, 0
        %v477 = vadd.f32 %v473, %v475
        %v478 = vpack.c.bf16 %v477, %v477
        %v479 = vld [vmem:[%s3] sm:$0xf]
        %v480 = vld [vmem:[%s3 + $0x4] sm:$0xf]
        %v481 = vld [vmem:[%s3 + $0x8] sm:$0xf]
        %v482 = vld [vmem:[%s3 + $0xc] sm:$0xf]
        %v483 = vld [vmem:[%s4] sm:$0x1]
        %v485 = vperm.slane %v483, 0
        %v491 = vunpack.c.l.b16 %v479
        %v492 = vunpack.c.l.b16 %v480
        %v493 = vunpack.c.l.b16 %v481
        %v494 = vunpack.c.l.b16 %v482
        %v495 = vpack.c.b16 %v492, %v491
        %v496 = vpack.c.b16 %v494, %v493
        %v500 = vsel %vm440, %v478, 0
        %502 = vmatpush.bf16.msra.mxu0 0
        %503 = vmatpush.bf16.msra.mxu0 0
        %504 = vmatpush.bf16.msra.mxu0 0
        %505 = vmatpush.bf16.msra.mxu0 0
        %506 = vmatpush.bf16.msra.mxu0 0
        %507 = vmatpush.bf16.msra.mxu0 0
        %508 = vmatpush.bf16.msra.mxu0 %v496
        %509 = vmatpush.bf16.msra.mxu0 %v495
        %510 = vmatmul.bf16.gmra.mxu0 %v500
        %v511 = vpop.f32.mrf.mxu0
        %v512 = vadd.f32 %v485, %v511
        %v513 = vpop.f32.mrf.mxu0
        %514 = vdwg.mxu0
        %v515 = vlaneseq
        %v516 = vshrl.u32 %v515, 7
        %v517 = vlaneseq
        %v518 = vand.u32 %v517, 127
        %vm519 = vcmp.le.s32.totalorder %v518, %v516
        %v520 = vpack.c.bf16 %v512, %v512
        %522 = vrot.lane.b32.xlu0 %v520, 96
        %v523 = vpop.permute.xlu0 %522
        %vm524 = vcmask 64512
        %v526 = vsel %vm524, %v520, 0
        %v529 = vsel %vm524, %v523, 0
        %531 = vmatpush.bf16.xpose.msra.mxu0 0
        %532 = vmatpush.bf16.xpose.msra.mxu0 0
        %533 = vmatpush.bf16.xpose.msra.mxu0 0
        %534 = vmatpush.bf16.xpose.msra.mxu0 0
        %535 = vmatpush.bf16.xpose.msra.mxu0 0
        %536 = vmatpush.bf16.xpose.msra.mxu0 0
        %537 = vmatpush.bf16.xpose.msra.mxu0 0
        %538 = vmatpush.bf16.xpose.msra.mxu0 %v529
        %539 = vmatmul.bf16.gmra.mxu0 %v526
        %v540 = vpop.f32.mrf.mxu0
        %v541 = vadd.f32 0.0, %v540
        %v542 = vpop.f32.mrf.mxu0
        %543 = vdwg.mxu0
        %v544 = vsel %vm519, %v541, -10000.0
        %v545 = vsel %vm524, %v544, -inf
        %546 = vmax.xlane.f32.xlu0 %v545
        %v547 = vpop.xlane.xlu0 %546
        %v548 = vsub.f32 %v544, %v547
        %v549 = vmul.f32 %v548, 1.442695
        %v550 = vpow.pop %v549
        %v551 = vsel %vm524, %v550, 0.0
        %552 = vadd.xlane.f32.xlu0 %v551
        %v553 = vpop.xlane.xlu0 %552
        %v554 = vrcp.pop %v553
        %v555 = vmul.f32 %v550, %v554
        %v556 = vpack.c.bf16 %v555, %v555
        %557 = vrot.lane.b32.xlu0 %v520, 64
        %v558 = vpop.permute.xlu0 %557
        %v560 = vsel %vm524, %v556, 0
        %vm562 = vcmask 1043456
        %v564 = vsel %vm562, %v558, 0
        %566 = vmatpush.bf16.msra.mxu0 0
        %567 = vmatpush.bf16.msra.mxu0 0
        %568 = vmatpush.bf16.msra.mxu0 0
        %569 = vmatpush.bf16.msra.mxu0 0
        %570 = vmatpush.bf16.msra.mxu0 0
        %571 = vmatpush.bf16.msra.mxu0 0
        %572 = vmatpush.bf16.msra.mxu0 0
        %573 = vmatpush.bf16.msra.mxu0 %v564
        %574 = vmatmul.bf16.gmra.mxu0 %v560
        %v575 = vpop.f32.mrf.mxu0
        %v576 = vadd.f32 0.0, %v575
        %v577 = vpop.f32.mrf.mxu0
        %578 = vdwg.mxu0
        %579 = vst.msk [vmem:[#allocation2] sm:$0xff] %vm524, %v576
        %580 = vrot.lane.b32.xlu0 %v520, 120
        %v581 = vpop.permute.xlu0 %580
        %582 = vrot.lane.b32.xlu0 %v520, 88
        %v583 = vpop.permute.xlu0 %582
        %v585 = vsel %vm524, %v581, 0
        %v588 = vsel %vm524, %v583, 0
        %590 = vmatpush.bf16.xpose.msra.mxu0 0
        %591 = vmatpush.bf16.xpose.msra.mxu0 0
        %592 = vmatpush.bf16.xpose.msra.mxu0 0
        %593 = vmatpush.bf16.xpose.msra.mxu0 0
        %594 = vmatpush.bf16.xpose.msra.mxu0 0
        %595 = vmatpush.bf16.xpose.msra.mxu0 0
        %596 = vmatpush.bf16.xpose.msra.mxu0 0
        %597 = vmatpush.bf16.xpose.msra.mxu0 %v588
        %598 = vmatmul.bf16.gmra.mxu0 %v585
        %v599 = vpop.f32.mrf.mxu0
        %v600 = vadd.f32 0.0, %v599
        %v601 = vpop.f32.mrf.mxu0
        %602 = vdwg.mxu0
        %v603 = vsel %vm519, %v600, -10000.0
        %v604 = vsel %vm524, %v603, -inf
        %605 = vmax.xlane.f32.xlu0 %v604
        %v606 = vpop.xlane.xlu0 %605
        %v607 = vsub.f32 %v603, %v606
        %v608 = vmul.f32 %v607, 1.442695
        %v609 = vpow.pop %v608
        %v610 = vsel %vm524, %v609, 0.0
        %611 = vadd.xlane.f32.xlu0 %v610
        %v612 = vpop.xlane.xlu0 %611
        %v613 = vrcp.pop %v612
        %v614 = vmul.f32 %v609, %v613
        %v615 = vpack.c.bf16 %v614, %v614
        %616 = vrot.lane.b32.xlu0 %v520, 56
        %v617 = vpop.permute.xlu0 %616
        %v619 = vsel %vm524, %v615, 0
        %v622 = vsel %vm562, %v617, 0
        %624 = vmatpush.bf16.msra.mxu0 0
        %625 = vmatpush.bf16.msra.mxu0 0
        %626 = vmatpush.bf16.msra.mxu0 0
        %627 = vmatpush.bf16.msra.mxu0 0
        %628 = vmatpush.bf16.msra.mxu0 0
        %629 = vmatpush.bf16.msra.mxu0 0
        %630 = vmatpush.bf16.msra.mxu0 0
        %631 = vmatpush.bf16.msra.mxu0 %v622
        %632 = vmatmul.bf16.gmra.mxu0 %v619
        %v633 = vpop.f32.mrf.mxu0
        %v634 = vadd.f32 0.0, %v633
        %v635 = vpop.f32.mrf.mxu0
        %636 = vdwg.mxu0
        %638 = vrot.lane.b32.xlu0 %v634, 8
        %v639 = vpop.permute.xlu0 %638
        %vm641 = vcmask 130112
        %642 = vst.msk [vmem:[#allocation2] sm:$0xff] %vm641, %v639
        %643 = vrot.lane.b32.xlu0 %v520, 112
        %v644 = vpop.permute.xlu0 %643
        %645 = vrot.lane.b32.xlu0 %v520, 80
        %v646 = vpop.permute.xlu0 %645
        %v648 = vsel %vm524, %v644, 0
        %v651 = vsel %vm524, %v646, 0
        %653 = vmatpush.bf16.xpose.msra.mxu0 0
        %654 = vmatpush.bf16.xpose.msra.mxu0 0
        %655 = vmatpush.bf16.xpose.msra.mxu0 0
        %656 = vmatpush.bf16.xpose.msra.mxu0 0
        %657 = vmatpush.bf16.xpose.msra.mxu0 0
        %658 = vmatpush.bf16.xpose.msra.mxu0 0
        %659 = vmatpush.bf16.xpose.msra.mxu0 0
        %660 = vmatpush.bf16.xpose.msra.mxu0 %v651
        %661 = vmatmul.bf16.gmra.mxu0 %v648
        %v662 = vpop.f32.mrf.mxu0
        %v663 = vadd.f32 0.0, %v662
        %v664 = vpop.f32.mrf.mxu0
        %665 = vdwg.mxu0
        %v666 = vsel %vm519, %v663, -10000.0
        %v667 = vsel %vm524, %v666, -inf
        %668 = vmax.xlane.f32.xlu0 %v667
        %v669 = vpop.xlane.xlu0 %668
        %v670 = vsub.f32 %v666, %v669
        %v671 = vmul.f32 %v670, 1.442695
        %v672 = vpow.pop %v671
        %v673 = vsel %vm524, %v672, 0.0
        %674 = vadd.xlane.f32.xlu0 %v673
        %v675 = vpop.xlane.xlu0 %674
        %v676 = vrcp.pop %v675
        %v677 = vmul.f32 %v672, %v676
        %v678 = vpack.c.bf16 %v677, %v677
        %679 = vrot.lane.b32.xlu0 %v520, 48
        %v680 = vpop.permute.xlu0 %679
        %v682 = vsel %vm524, %v678, 0
        %v685 = vsel %vm562, %v680, 0
        %687 = vmatpush.bf16.msra.mxu0 0
        %688 = vmatpush.bf16.msra.mxu0 0
        %689 = vmatpush.bf16.msra.mxu0 0
        %690 = vmatpush.bf16.msra.mxu0 0
        %691 = vmatpush.bf16.msra.mxu0 0
        %692 = vmatpush.bf16.msra.mxu0 0
        %693 = vmatpush.bf16.msra.mxu0 0
        %694 = vmatpush.bf16.msra.mxu0 %v685
        %695 = vmatmul.bf16.gmra.mxu0 %v682
        %v696 = vpop.f32.mrf.mxu0
        %v697 = vadd.f32 0.0, %v696
        %v698 = vpop.f32.mrf.mxu0
        %699 = vdwg.mxu0
        %701 = vrot.lane.b32.xlu0 %v697, 16
        %v702 = vpop.permute.xlu0 %701
        %vm704 = vcmask 195712
        %705 = vst.msk [vmem:[#allocation2] sm:$0xff] %vm704, %v702
        %706 = vrot.lane.b32.xlu0 %v520, 104
        %v707 = vpop.permute.xlu0 %706
        %708 = vrot.lane.b32.xlu0 %v520, 72
        %v709 = vpop.permute.xlu0 %708
        %v711 = vsel %vm524, %v707, 0
        %v714 = vsel %vm524, %v709, 0
        %716 = vmatpush.bf16.xpose.msra.mxu0 0
        %717 = vmatpush.bf16.xpose.msra.mxu0 0
        %718 = vmatpush.bf16.xpose.msra.mxu0 0
        %719 = vmatpush.bf16.xpose.msra.mxu0 0
        %720 = vmatpush.bf16.xpose.msra.mxu0 0
        %721 = vmatpush.bf16.xpose.msra.mxu0 0
        %722 = vmatpush.bf16.xpose.msra.mxu0 0
        %723 = vmatpush.bf16.xpose.msra.mxu0 %v714
        %724 = vmatmul.bf16.gmra.mxu0 %v711
        %v725 = vpop.f32.mrf.mxu0
        %v726 = vadd.f32 0.0, %v725
        %v727 = vpop.f32.mrf.mxu0
        %728 = vdwg.mxu0
        %v729 = vsel %vm519, %v726, -10000.0
        %v730 = vsel %vm524, %v729, -inf
        %731 = vmax.xlane.f32.xlu0 %v730
        %v732 = vpop.xlane.xlu0 %731
        %v733 = vsub.f32 %v729, %v732
        %v734 = vmul.f32 %v733, 1.442695
        %v735 = vpow.pop %v734
        %v736 = vsel %vm524, %v735, 0.0
        %737 = vadd.xlane.f32.xlu0 %v736
        %v738 = vpop.xlane.xlu0 %737
        %v739 = vrcp.pop %v738
        %v740 = vmul.f32 %v735, %v739
        %v741 = vpack.c.bf16 %v740, %v740
        %742 = vrot.lane.b32.xlu0 %v520, 40
        %v743 = vpop.permute.xlu0 %742
        %v745 = vsel %vm524, %v741, 0
        %v748 = vsel %vm562, %v743, 0
        %750 = vmatpush.bf16.msra.mxu0 0
        %751 = vmatpush.bf16.msra.mxu0 0
        %752 = vmatpush.bf16.msra.mxu0 0
        %753 = vmatpush.bf16.msra.mxu0 0
        %754 = vmatpush.bf16.msra.mxu0 0
        %755 = vmatpush.bf16.msra.mxu0 0
        %756 = vmatpush.bf16.msra.mxu0 0
        %757 = vmatpush.bf16.msra.mxu0 %v748
        %758 = vmatmul.bf16.gmra.mxu0 %v745
        %v759 = vpop.f32.mrf.mxu0
        %v760 = vadd.f32 0.0, %v759
        %v761 = vpop.f32.mrf.mxu0
        %762 = vdwg.mxu0
        %764 = vrot.lane.b32.xlu0 %v760, 24
        %v765 = vpop.permute.xlu0 %764
        %vm767 = vcmask 261312
        %768 = vst.msk [vmem:[#allocation2] sm:$0xff] %vm767, %v765
        %v769 = vld [vmem:[#allocation2] sm:$0xff]
        %v770 = vpack.c.bf16 %v769, %v769
        %v771 = vld [vmem:[%s5] sm:$0xf]
        %v772 = vld [vmem:[%s5 + $0x4] sm:$0xf]
        %v773 = vld [vmem:[%s5 + $0x8] sm:$0xf]
        %v774 = vld [vmem:[%s5 + $0xc] sm:$0xf]
        %v775 = vld [vmem:[%s6] sm:$0x1]
        %v777 = vperm.slane %v775, 0
        %v783 = vunpack.c.l.b16 %v771
        %v784 = vunpack.c.l.b16 %v772
        %v785 = vunpack.c.l.b16 %v773
        %v786 = vunpack.c.l.b16 %v774
        %v787 = vpack.c.b16 %v784, %v783
        %v788 = vpack.c.b16 %v786, %v785
        %v792 = vsel %vm440, %v770, 0
        %794 = vmatpush.bf16.msra.mxu0 0
        %795 = vmatpush.bf16.msra.mxu0 0
        %796 = vmatpush.bf16.msra.mxu0 0
        %797 = vmatpush.bf16.msra.mxu0 0
        %798 = vmatpush.bf16.msra.mxu0 0
        %799 = vmatpush.bf16.msra.mxu0 0
        %800 = vmatpush.bf16.msra.mxu0 %v788
        %801 = vmatpush.bf16.msra.mxu0 %v787
        %802 = vmatmul.bf16.gmra.mxu0 %v792
        %v803 = vpop.f32.mrf.mxu0
        %v804 = vadd.f32 %v777, %v803
        %v805 = vpop.f32.mrf.mxu0
        %806 = vdwg.mxu0
        %v807 = vadd.f32 %v437, %v804
        %v808 = vld [vmem:[%s7] sm:$0x1]
        %v809 = vld [vmem:[%s8] sm:$0x1]
        %v810 = vsel %vm440, %v807, 0.0
        %811 = vadd.xlane.f32.xlu0 %v810
        %v812 = vpop.xlane.xlu0 %811
        %v813 = vmul.f32 %v812, %v450
        %v814 = vsub.f32 %v807, %v813
        %v815 = vmul.f32 %v814, %v814
        %v816 = vsel %vm440, %v815, 0.0
        %817 = vadd.xlane.f32.xlu0 %v816
        %v818 = vpop.xlane.xlu0 %817
        %v819 = vmul.f32 %v818, %v450
        %v820 = vadd.f32 %v819, 1e-05
        %v821 = vrsqrt.pop %v820
        %v822 = vmul.f32 %v821, %v820
        %v823 = vmul.f32 %v822, %v821
        %v824 = vmul.f32 0.5, %v823
        %v825 = vsub.f32 1.5, %v824
        %v826 = vmul.f32 %v821, %v825
        %vm827 = vweird.f32 %v820
        %vm828 = vweird.f32 %v821
        %vm829 = vmor %vm827, %vm828
        %v830 = vsel %vm829, %v821, %v826
        %v831 = vmul.f32 %v814, %v830
        %v833 = vperm.slane %v808, 0
        %v835 = vmul.f32 %v831, %v833
        %v837 = vperm.slane %v809, 0
        %v839 = vadd.f32 %v835, %v837
        %v840 = vpack.c.bf16 %v839, %v839
        %v841 = vld [vmem:[%s9] sm:$0xf]
        %v842 = vld [vmem:[%s9 + $0x4] sm:$0xf]
        %v843 = vld [vmem:[%s9 + $0x8] sm:$0xf]
        %v844 = vld [vmem:[%s9 + $0xc] sm:$0xf]
        %v845 = vld [vmem:[%s10] sm:$0x1]
        %v847 = vperm.slane %v845, 0
        %v853 = vunpack.c.l.b16 %v841
        %v854 = vunpack.c.l.b16 %v842
        %v855 = vunpack.c.l.b16 %v843
        %v856 = vunpack.c.l.b16 %v844
        %v857 = vpack.c.b16 %v854, %v853
        %v858 = vpack.c.b16 %v856, %v855
        %v862 = vsel %vm440, %v840, 0
        %864 = vmatpush.bf16.msra.mxu0 0
        %865 = vmatpush.bf16.msra.mxu0 0
        %866 = vmatpush.bf16.msra.mxu0 0
        %867 = vmatpush.bf16.msra.mxu0 0
        %868 = vmatpush.bf16.msra.mxu0 0
        %869 = vmatpush.bf16.msra.mxu0 0
        %870 = vmatpush.bf16.msra.mxu0 %v858
        %871 = vmatpush.bf16.msra.mxu0 %v857
        %872 = vmatmul.bf16.gmra.mxu0 %v862
        %v873 = vpop.f32.mrf.mxu0
        %v874 = vadd.f32 %v847, %v873
        %v875 = vpop.f32.mrf.mxu0
        %876 = vdwg.mxu0
        %v877 = vmul.f32 %v874, %v874
        %v878 = vmul.f32 %v874, %v877
        %v879 = vmul.f32 %v878, 0.044715
        %v880 = vadd.f32 %v874, %v879
        %v881 = vmul.f32 %v880, 0.7978846
        %v882 = vtanh.pop %v881
        %v883 = vadd.f32 %v882, 1.0
        %v884 = vmul.f32 %v883, 0.5
        %v885 = vmul.f32 %v874, %v884
        %v886 = vpack.c.bf16 %v885, %v885
        %v887 = vld [vmem:[%s11] sm:$0xf]
        %v888 = vld [vmem:[%s11 + $0x4] sm:$0xf]
        %v889 = vld [vmem:[%s11 + $0x8] sm:$0xf]
        %v890 = vld [vmem:[%s11 + $0xc] sm:$0xf]
        %v891 = vld [vmem:[%s11 + $0x10] sm:$0xf]
        %v892 = vld [vmem:[%s11 + $0x14] sm:$0xf]
        %v893 = vld [vmem:[%s11 + $0x18] sm:$0xf]
        %v894 = vld [vmem:[%s11 + $0x1c] sm:$0xf]
        %v895 = vld [vmem:[%s11 + $0x20] sm:$0xf]
        %v896 = vld [vmem:[%s11 + $0x24] sm:$0xf]
        %v897 = vld [vmem:[%s11 + $0x28] sm:$0xf]
        %v898 = vld [vmem:[%s11 + $0x2c] sm:$0xf]
        %v899 = vld [vmem:[%s11 + $0x30] sm:$0xf]
        %v900 = vld [vmem:[%s11 + $0x34] sm:$0xf]
        %v901 = vld [vmem:[%s11 + $0x38] sm:$0xf]
        %v902 = vld [vmem:[%s11 + $0x3c] sm:$0xf]
        %v903 = vld [vmem:[%s12] sm:$0x1]
        %v905 = vperm.slane %v903, 0
        %v923 = vunpack.c.l.b16 %v887
        %v924 = vunpack.c.l.b16 %v888
        %v925 = vunpack.c.l.b16 %v889
        %v926 = vunpack.c.l.b16 %v890
        %v927 = vunpack.c.l.b16 %v891
        %v928 = vunpack.c.l.b16 %v892
        %v929 = vunpack.c.l.b16 %v893
        %v930 = vunpack.c.l.b16 %v894
        %v931 = vunpack.c.l.b16 %v895
        %v932 = vunpack.c.l.b16 %v896
        %v933 = vunpack.c.l.b16 %v897
        %v934 = vunpack.c.l.b16 %v898
        %v935 = vunpack.c.l.b16 %v899
        %v936 = vunpack.c.l.b16 %v900
        %v937 = vunpack.c.l.b16 %v901
        %v938 = vunpack.c.l.b16 %v902
        %v939 = vpack.c.b16 %v924, %v923
        %v940 = vpack.c.b16 %v926, %v925
        %v941 = vpack.c.b16 %v928, %v927
        %v942 = vpack.c.b16 %v930, %v929
        %v943 = vpack.c.b16 %v932, %v931
        %v944 = vpack.c.b16 %v934, %v933
        %v945 = vpack.c.b16 %v936, %v935
        %v946 = vpack.c.b16 %v938, %v937
        %955 = vmatpush.bf16.msra.mxu0 %v946
        %956 = vmatpush.bf16.msra.mxu0 %v945
        %957 = vmatpush.bf16.msra.mxu0 %v944
        %958 = vmatpush.bf16.msra.mxu0 %v943
        %959 = vmatpush.bf16.msra.mxu0 %v942
        %960 = vmatpush.bf16.msra.mxu0 %v941
        %961 = vmatpush.bf16.msra.mxu0 %v940
        %962 = vmatpush.bf16.msra.mxu0 %v939
        %963 = vmatmul.bf16.gmra.mxu0 %v886
        %v964 = vpop.f32.mrf.mxu0
        %v965 = vadd.f32 %v905, %v964
        %v966 = vpop.f32.mrf.mxu0
        %967 = vdwg.mxu0
        %v968 = vadd.f32 %v807, %v965
        %969 = vst.msk [vmem:[%s431] sm:$0xff] %vm440, %v968
        %s970 = sand.u32 %s313, 1
        %s971 = scalar_lea.sflag [#allocation4], %s970
        %s972 = sand.u32 %s313, 1
        %s973 = smul.addr %s972, 8
        %s974 = scalar_lea.vmem [#allocation3], %s973
        // Predicated region
        $region73: #{tpu_custom_call.1} parent=71 // pred_check
          %p975 = pneg %p323
        $region74: #{tpu_custom_call.1} parent=71 // pred_check_branch
          %977 = sbr.rel (%p975) target = $region76
        $region75: #{tpu_custom_call.1} parent=71 // pred_region
          %979 = vsyncadd %s971, 0
          %s980 = smul.addr %s27, 8
          %s981 = scalar_lea.hbm %s13, %s980
          %s983 = sshll.u32 %s974, 4
          %s984 = int_to_ptr.vmem [resolvable:$true] %s983
          %s985 = sshll.u32 %s981, 4
          %s986 = int_to_ptr.hbm [resolvable:$true] %s985
          %988 = dma.vmem_to_hbm [thread:$0]  %s984, 128, %s986, %s971
        $region76: #{tpu_custom_call.1} parent=71 // pred_fallthru
          _
      $region72: #{tpu_custom_call.1} parent=5 // pred_fallthru
        _
      %p989 = scmp.le.s32.totalorder 2, %s22
      // Predicated region
      $region77: #{tpu_custom_call.1} parent=5 // pred_check
        %p990 = pneg %p989
      $region78: #{tpu_custom_call.1} parent=5 // pred_check_branch
        %992 = sbr.rel (%p990) target = $region80
      $region79: #{tpu_custom_call.1} parent=5 // pred_region
        %s993 = ssub.s32 %s22, 2
        // Predicated region
        $region81: #{tpu_custom_call.1} parent=79 // pred_check
          %p994 = pneg %p329
        $region82: #{tpu_custom_call.1} parent=79 // pred_check_branch
          %996 = sbr.rel (%p994) target = $region84
        $region83: #{tpu_custom_call.1} parent=79 // pred_region
          %s997 = sand.u32 %s314, 1
          %s998 = scalar_lea.sflag [#allocation4], %s997
          %s999 = sand.u32 %s314, 1
          %s1000 = smul.addr %s999, 8
          %s1001 = scalar_lea.vmem [#allocation3], %s1000
          %1003 = dma.done %s998, 128
        $region84: #{tpu_custom_call.1} parent=79 // pred_fallthru
          _
      $region80: #{tpu_custom_call.1} parent=5 // pred_fallthru
        _
    $region6: #{tpu_custom_call.1} parent=1 // loop_footer
      %s26 = sadd.s32 1, %s22
    $region7: #{tpu_custom_call.1} parent=1 // loop_footer_branch
      %21 = sbr.rel target = $region3
    $region8: #{tpu_custom_call.1} parent=1 // loop_exit
      _
    %1004 = vsyncpa [#allocation4], 1
    %s1005 = scalar_lea.sflag [#allocation4], 1
    %1006 = vsyncpa %s1005, 1

</llo_original>
